<compile_context>
chip_gen: v7x
topology: tpu7x:2x2x1
jax: 0.10.0
libtpu: 0.0.40
codegen_flags: <defaults>
</compile_context>

<pallas_src>
import functools

import jax
import jax.numpy as jnp
from jax.experimental import pallas as pl
from jax.experimental.pallas import tpu as pltpu

NUM_BOND_TYPE = 6
NUM_BOND_DIRECTION = 3
NUM_ATOM_TYPE = 120
NUM_CHIRALITY_TAG = 3

EMB_DIM = 32
NUM_LAYER = 2
NUM_TASKS = 3
BN_EPS = 1e-5


def _round_up(x, m):
    return ((x + m - 1) // m) * m


def _pick_vmem_limit_bytes():
    # ~3/4 of physical VMEM per core: ~48 MiB on v7x (64 MiB), ~96 MiB on v5e/v6e (128 MiB).
    try:
        cap = int(pltpu.get_tpu_info().vmem_capacity_bytes)
    except Exception:
        cap = 64 * 1024 * 1024
    return int(min((cap * 3) // 4, 112 * 1024 * 1024))


# ---------------------------------------------------------------------------
# Fused kernel: grid = (layer, node-row tile).  Both axes sequential.
# ---------------------------------------------------------------------------
def _fused_gnn_kernel(h0_ref, a_ref, eagg_ref, w1_ref, b1_ref, w2_ref, b2_ref,
                      gamma_ref, beta_ref, p_ref, invcnt_ref, wp_ref, bp_ref,
                      out_ref,
                      h_bf16, h2_f32, sum_acc, sumsq_acc,
                      *, num_layers, num_tiles, tile_n, n_real):
    l_id = pl.program_id(0)                 # layer (recurrent -> arbitrary)
    t_id = pl.program_id(1)                 # node-row tile (BN accumulator -> arbitrary)
    inv_n = 1.0 / float(n_real)

    # ---- one-time init -----------------------------------------------------
    @pl.when((l_id == 0) & (t_id == 0))
    def _init():
        h_bf16[...] = h0_ref[...]
        sum_acc[...] = jnp.zeros_like(sum_acc)
        sumsq_acc[...] = jnp.zeros_like(sumsq_acc)

    # ---- per tile: aggregation + GIN MLP + BN statistic accumulation --------
    a_tile = a_ref[...].astype(jnp.float32).astype(jnp.bfloat16)   # int8 HBM -> bf16 at the dot
    agg = jnp.dot(a_tile, h_bf16[...], preferred_element_type=jnp.float32)
    agg = agg + eagg_ref[0].astype(jnp.float32)                    # [tn, Dp] f32

    z1 = jnp.dot(agg.astype(jnp.bfloat16), w1_ref[0],
                 preferred_element_type=jnp.float32) + b1_ref[0]
    z1 = jnp.maximum(z1, 0.0).astype(jnp.bfloat16)                 # bf16 ReLU output
    h2 = jnp.dot(z1, w2_ref[0],
                 preferred_element_type=jnp.float32) + b2_ref[0]   # [tn, Dp] f32

    row0 = pl.multiple_of(t_id * tile_n, tile_n)
    h2_f32[pl.ds(row0, tile_n), :] = h2                            # stage pre-BN h2

    # BN stats via masked ones-row on the MXU (padded rows excluded)
    gids = row0 + jax.lax.broadcasted_iota(jnp.int32, (1, tile_n), 1)
    mrow = (gids < n_real).astype(jnp.float32)                     # [1, tn]
    sum_acc[...] += jnp.dot(mrow, h2, preferred_element_type=jnp.float32)
    sumsq_acc[...] += jnp.dot(mrow, h2 * h2, preferred_element_type=jnp.float32)

    # ---- layer finalize (last tile): BN apply (+ReLU on all but last layer) --
    @pl.when(t_id == num_tiles - 1)
    def _finalize():
        mean = sum_acc[...] * inv_n
        var = jnp.maximum(sumsq_acc[...] * inv_n - mean * mean, 0.0)
        scale = gamma_ref[0] * jax.lax.rsqrt(var + BN_EPS)
        shift = beta_ref[0] - mean * scale
        hn = h2_f32[...] * scale + shift
        is_last = l_id == num_layers - 1
        hn = jnp.where(is_last, hn, jnp.maximum(hn, 0.0))          # dropout(p=0) = identity
        h_bf16[...] = hn.astype(jnp.bfloat16)
        sum_acc[...] = jnp.zeros_like(sum_acc)
        sumsq_acc[...] = jnp.zeros_like(sumsq_acc)

    # ---- very last grid step: mean pool + prediction linear -----------------
    @pl.when((l_id == num_layers - 1) & (t_id == num_tiles - 1))
    def _head():
        pooled = jnp.dot(p_ref[...], h_bf16[...],
                         preferred_element_type=jnp.float32)       # 0/1 indicator -> sums
        pooled = pooled * invcnt_ref[...]                          # exact per-graph mean
        out_ref[...] = jnp.dot(pooled.astype(jnp.bfloat16), wp_ref[...],
                               preferred_element_type=jnp.float32) + bp_ref[...]


# ---------------------------------------------------------------------------
# Parameter init (deterministic, synthetic; matches module shapes)
# ---------------------------------------------------------------------------
def init_params(key, emb_dim, num_layer, num_tasks):
    keys = jax.random.split(key, 8 + 8 * num_layer)
    ki = iter(keys)

    def xavier(k, shape):
        fan_in, fan_out = shape
        a = jnp.sqrt(6.0 / (fan_in + fan_out))
        return jax.random.uniform(k, shape, jnp.float32, -a, a)

    params = {
        "x_emb1": xavier(next(ki), (NUM_ATOM_TYPE, emb_dim)),
        "x_emb2": xavier(next(ki), (NUM_CHIRALITY_TAG, emb_dim)),
        "pred_w": xavier(next(ki), (emb_dim, num_tasks)),
        "pred_b": jnp.zeros((1, num_tasks), jnp.float32),
        "layers": [],
    }
    for _ in range(num_layer):
        layer = {
            "edge_emb1": xavier(next(ki), (NUM_BOND_TYPE, emb_dim)),
            "edge_emb2": xavier(next(ki), (NUM_BOND_DIRECTION, emb_dim)),
            "w1": xavier(next(ki), (emb_dim, 2 * emb_dim)),
            "b1": 0.01 * jax.random.normal(next(ki), (1, 2 * emb_dim), jnp.float32),
            "w2": xavier(next(ki), (2 * emb_dim, emb_dim)),
            "b2": 0.01 * jax.random.normal(next(ki), (1, emb_dim), jnp.float32),
            "gamma": jnp.ones((1, emb_dim), jnp.float32),
            "beta": jnp.zeros((1, emb_dim), jnp.float32),
        }
        params["layers"].append(layer)
    return params


# ---------------------------------------------------------------------------
# Forward: index glue + padding in JAX, all heavy compute in one pallas_call
# ---------------------------------------------------------------------------
def gnn_graphpred_forward(params, x, edge_index, edge_attr, batch, num_graphs):
    n = int(x.shape[0])
    assert n >= 1, "empty graph batch"
    d = params["x_emb1"].shape[1]
    num_layers = len(params["layers"])
    nt = params["pred_w"].shape[1]

    # node embeddings: x_embedding1(x[:,0]) + x_embedding2(x[:,1])
    h0 = jnp.take(params["x_emb1"], x[:, 0], axis=0) + \
         jnp.take(params["x_emb2"], x[:, 1], axis=0)              # [N, D]

    # add self loops: edges (i, i), attr = (bond_type=4, direction=0)
    loop_idx = jnp.arange(n, dtype=edge_index.dtype)
    src = jnp.concatenate([edge_index[0], loop_idx])
    dst = jnp.concatenate([edge_index[1], loop_idx])
    self_attr = jnp.zeros((n, 2), edge_attr.dtype).at[:, 0].set(4)
    ea = jnp.concatenate([edge_attr, self_attr], axis=0)          # [E+N, 2]

    # ---- TPU tiling / padding sizes ---------------------------------------
    tile_n = min(256, _round_up(n, 32))         # int8 sublane packing = 32 rows
    np_pad = _round_up(n, tile_n)
    num_tiles = np_pad // tile_n
    dp = _round_up(d, 128)
    hp = _round_up(2 * d, 128)
    gp = _round_up(num_graphs, 8)
    tp = _round_up(nt, 128)

    # adjacency with multiplicities (incl. self loops), built directly at int8:
    # A[i, j] = #edges j -> i.  (exact for multiplicities <= 127)
    A = jnp.zeros((np_pad, np_pad), jnp.int8).at[dst, src].add(
        jnp.ones_like(dst, dtype=jnp.int8))
    # TODO(synk): for N beyond a few thousand nodes, replace the dense A@h with a
    # CSR / scalar-prefetch gather formulation (avg molecular degree ~3).

    # per-layer edge bias aggregated onto destination nodes (independent of h)
    edge_aggs = []
    for lp in params["layers"]:
        ee = jnp.take(lp["edge_emb1"], ea[:, 0], axis=0) + \
             jnp.take(lp["edge_emb2"], ea[:, 1], axis=0)          # [E+N, D]
        edge_aggs.append(jax.ops.segment_sum(ee, dst, num_segments=n))
    edge_agg = jnp.stack(edge_aggs, axis=0)                       # [L, N, D]

    # mean pool: exact 0/1 indicator (bf16) + per-graph 1/count rescale (f32)
    counts = jax.ops.segment_sum(jnp.ones((n,), jnp.float32), batch,
                                 num_segments=num_graphs)
    counts = jnp.maximum(counts, 1.0)
    P = jnp.zeros((gp, np_pad), jnp.bfloat16).at[batch, jnp.arange(n)].set(1.0)
    invcnt = jnp.pad((1.0 / counts)[:, None].astype(jnp.float32),
                     ((0, gp - num_graphs), (0, 0)))              # [gp, 1]

    def pad2(arr, r, c):
        return jnp.pad(arr, ((0, r - arr.shape[0]), (0, c - arr.shape[1])))

    def pad3(arr, r, c):
        return jnp.pad(arr, ((0, 0), (0, r - arr.shape[1]), (0, c - arr.shape[2])))

    def stack(name):
        return jnp.stack([lp[name] for lp in params["layers"]])

    h0_p = pad2(h0, np_pad, dp).astype(jnp.bfloat16)
    eagg_p = pad3(edge_agg, np_pad, dp).astype(jnp.bfloat16)
    w1_p = pad3(stack("w1"), dp, hp).astype(jnp.bfloat16)
    b1_p = pad3(stack("b1"), 1, hp)
    w2_p = pad3(stack("w2"), hp, dp).astype(jnp.bfloat16)
    b2_p = pad3(stack("b2"), 1, dp)
    gamma_p = pad3(stack("gamma"), 1, dp)
    beta_p = pad3(stack("beta"), 1, dp)
    wp_p = pad2(params["pred_w"], dp, tp).astype(jnp.bfloat16)
    bp_p = pad2(params["pred_b"], 1, tp)

    const2 = lambda l, t: (0, 0)
    per_layer = lambda l, t: (l, 0, 0)

    in_specs = [
        pl.BlockSpec((np_pad, dp), const2),                       # h0 (fetched once)
        pl.BlockSpec((tile_n, np_pad), lambda l, t: (t, 0)),      # A row tiles (pipelined, int8)
        pl.BlockSpec((1, tile_n, dp), lambda l, t: (l, t, 0)),    # edge-agg tiles (bf16)
        pl.BlockSpec((1, dp, hp), per_layer),                     # w1
        pl.BlockSpec((1, 1, hp), per_layer),                      # b1
        pl.BlockSpec((1, hp, dp), per_layer),                     # w2
        pl.BlockSpec((1, 1, dp), per_layer),                      # b2
        pl.BlockSpec((1, 1, dp), per_layer),                      # gamma
        pl.BlockSpec((1, 1, dp), per_layer),                      # beta
        pl.BlockSpec((gp, np_pad), const2),                       # P (0/1 indicator, bf16)
        pl.BlockSpec((gp, 1), const2),                            # 1/count per graph (f32)
        pl.BlockSpec((dp, tp), const2),                           # pred W
        pl.BlockSpec((1, tp), const2),                            # pred b
    ]

    kernel = functools.partial(_fused_gnn_kernel, num_layers=num_layers,
                               num_tiles=num_tiles, tile_n=tile_n, n_real=n)

    grid_spec = pltpu.PrefetchScalarGridSpec(
        num_scalar_prefetch=0,
        grid=(num_layers, num_tiles),
        in_specs=in_specs,
        out_specs=pl.BlockSpec((gp, tp), const2),
        scratch_shapes=[
            pltpu.VMEM((np_pad, dp), jnp.bfloat16),   # h: current node features (resident)
            pltpu.VMEM((np_pad, dp), jnp.float32),    # pre-BN h2 staging buffer
            pltpu.VMEM((1, dp), jnp.float32),         # BN sum accumulator
            pltpu.VMEM((1, dp), jnp.float32),         # BN sum-of-squares accumulator
        ],
    )

    out_p = pl.pallas_call(
        kernel,
        out_shape=jax.ShapeDtypeStruct((gp, tp), jnp.float32),
        grid_spec=grid_spec,
        compiler_params=pltpu.CompilerParams(
            # Both axes carry dependencies (layer recurrence; BN accumulator over
            # tiles) so they must stay sequential.
            # TODO(synk): two-pass per-layer structure (parallel tile pass + tiny
            # stat combine + parallel normalize) to shard tiles over v7x's 2 TCs.
            dimension_semantics=("arbitrary", "arbitrary"),
            vmem_limit_bytes=_pick_vmem_limit_bytes(),
        ),
    )(h0_p, A, eagg_p, w1_p, b1_p, w2_p, b2_p, gamma_p, beta_p,
      P, invcnt, wp_p, bp_p)

    return out_p[:num_graphs, :nt]                                # [G, num_tasks]


# ---------------------------------------------------------------------------
if __name__ == "__main__":
    key = jax.random.PRNGKey(0)
    k_param, k_bond, k_dir, k_atom, k_chir = jax.random.split(key, 5)

    # Two small molecule-like graphs: 8 nodes total, 12 directed edges.
    N = 8
    NUM_GRAPHS = 2
    und = [(0, 1), (1, 2), (2, 3), (4, 5), (5, 6), (6, 7)]
    src = [a for a, b in und] + [b for a, b in und]
    dst = [b for a, b in und] + [a for a, b in und]
    edge_index = jnp.array([src, dst], dtype=jnp.int32)           # [2, 12]
    E = edge_index.shape[1]

    x = jnp.stack([
        jax.random.randint(k_atom, (N,), 0, NUM_ATOM_TYPE),
        jax.random.randint(k_chir, (N,), 0, NUM_CHIRALITY_TAG),
    ], axis=1).astype(jnp.int32)                                  # [8, 2]
    edge_attr = jnp.stack([
        jax.random.randint(k_bond, (E,), 0, 4),                   # bond type (4 = self loop)
        jax.random.randint(k_dir, (E,), 0, NUM_BOND_DIRECTION),   # bond direction
    ], axis=1).astype(jnp.int32)                                  # [12, 2]
    batch = jnp.array([0, 0, 0, 0, 1, 1, 1, 1], dtype=jnp.int32)

    params = init_params(k_param, EMB_DIM, NUM_LAYER, NUM_TASKS)

    out = gnn_graphpred_forward(params, x, edge_index, edge_attr, batch, NUM_GRAPHS)
    out = jax.block_until_ready(out)

    assert out.shape == (NUM_GRAPHS, NUM_TASKS), out.shape
    assert bool(jnp.all(jnp.isfinite(out)))
    print("KERNEL_OK")
</pallas_src>

<mosaic_0001>
module attributes {stable_mosaic.version = 11 : i64} {
  func.func @_fused_gnn_kernel(%arg0: i32, %arg1: i32, %arg2: memref<32x128xbf16, #tpu.memory_space<vmem>>, %arg3: memref<32x32xi8, #tpu.memory_space<vmem>>, %arg4: memref<1x32x128xbf16, #tpu.memory_space<vmem>>, %arg5: memref<1x128x128xbf16, #tpu.memory_space<vmem>>, %arg6: memref<1x1x128xf32, #tpu.memory_space<vmem>>, %arg7: memref<1x128x128xbf16, #tpu.memory_space<vmem>>, %arg8: memref<1x1x128xf32, #tpu.memory_space<vmem>>, %arg9: memref<1x1x128xf32, #tpu.memory_space<vmem>>, %arg10: memref<1x1x128xf32, #tpu.memory_space<vmem>>, %arg11: memref<8x32xbf16, #tpu.memory_space<vmem>>, %arg12: memref<8x1xf32, #tpu.memory_space<vmem>>, %arg13: memref<128x128xbf16, #tpu.memory_space<vmem>>, %arg14: memref<1x128xf32, #tpu.memory_space<vmem>>, %arg15: memref<8x128xf32, #tpu.memory_space<vmem>>, %arg16: memref<32x128xbf16, #tpu.memory_space<vmem>>, %arg17: memref<32x128xf32, #tpu.memory_space<vmem>>, %arg18: memref<1x128xf32, #tpu.memory_space<vmem>>, %arg19: memref<1x128xf32, #tpu.memory_space<vmem>>) attributes {dimension_semantics = [#tpu.dimension_semantics<arbitrary>, #tpu.dimension_semantics<arbitrary>], iteration_bounds = array<i64: 2, 1>, scalar_prefetch = 0 : i64, scratch_operands = 4 : i64, tpu.core_type = #tpu.core_type<tc>, window_params = [{pipeline_mode = #tpu.pipeline_mode<synchronous>, transform_indices = @transform_0, window_bounds = array<i64: 32, 128>}, {transform_indices = @transform_1, window_bounds = array<i64: 32, 32>}, {transform_indices = @transform_2, window_bounds = array<i64: 1, 32, 128>}, {transform_indices = @transform_3, window_bounds = array<i64: 1, 128, 128>}, {transform_indices = @transform_4, window_bounds = array<i64: 1, 1, 128>}, {transform_indices = @transform_5, window_bounds = array<i64: 1, 128, 128>}, {transform_indices = @transform_6, window_bounds = array<i64: 1, 1, 128>}, {transform_indices = @transform_7, window_bounds = array<i64: 1, 1, 128>}, {transform_indices = @transform_8, window_bounds = array<i64: 1, 1, 128>}, {pipeline_mode = #tpu.pipeline_mode<synchronous>, transform_indices = @transform_9, window_bounds = array<i64: 8, 32>}, {pipeline_mode = #tpu.pipeline_mode<synchronous>, transform_indices = @transform_10, window_bounds = array<i64: 8, 1>}, {pipeline_mode = #tpu.pipeline_mode<synchronous>, transform_indices = @transform_11, window_bounds = array<i64: 128, 128>}, {pipeline_mode = #tpu.pipeline_mode<synchronous>, transform_indices = @transform_12, window_bounds = array<i64: 1, 128>}, {pipeline_mode = #tpu.pipeline_mode<synchronous>, transform_indices = @transform_13, window_bounds = array<i64: 8, 128>}]} {
    %c0_i32 = arith.constant 0 : i32
    %0 = arith.cmpi eq, %arg0, %c0_i32 : i32
    %c0_i32_0 = arith.constant 0 : i32
    %1 = arith.cmpi eq, %arg1, %c0_i32_0 : i32
    %2 = arith.andi %0, %1 : i1
    %3 = arith.extui %2 : i1 to i32
    %c0_i32_1 = arith.constant 0 : i32
    %4 = arith.cmpi ne, %3, %c0_i32_1 : i32
    scf.if %4 {
      %c0_38 = arith.constant 0 : index
      %c0_39 = arith.constant 0 : index
      %60 = vector.load %arg2[%c0_38, %c0_39] : memref<32x128xbf16, #tpu.memory_space<vmem>>, vector<32x128xbf16>
      %c0_40 = arith.constant 0 : index
      %c0_41 = arith.constant 0 : index
      %61 = vector.load %arg16[%c0_40, %c0_41] : memref<32x128xbf16, #tpu.memory_space<vmem>>, vector<32x128xbf16>
      tpu.vector_store %arg16[%c0_40, %c0_41], %60 {strides = array<i32>} : memref<32x128xbf16, #tpu.memory_space<vmem>>, vector<32x128xbf16>,
      %cst_42 = arith.constant 0.000000e+00 : f32
      %62 = vector.broadcast %cst_42 : f32 to vector<1x128xf32>
      %c0_43 = arith.constant 0 : index
      %c0_44 = arith.constant 0 : index
      %63 = vector.load %arg18[%c0_43, %c0_44] : memref<1x128xf32, #tpu.memory_space<vmem>>, vector<1x128xf32>
      tpu.vector_store %arg18[%c0_43, %c0_44], %62 {strides = array<i32>} : memref<1x128xf32, #tpu.memory_space<vmem>>, vector<1x128xf32>,
      %cst_45 = arith.constant 0.000000e+00 : f32
      %64 = vector.broadcast %cst_45 : f32 to vector<1x128xf32>
      %c0_46 = arith.constant 0 : index
      %c0_47 = arith.constant 0 : index
      %65 = vector.load %arg19[%c0_46, %c0_47] : memref<1x128xf32, #tpu.memory_space<vmem>>, vector<1x128xf32>
      tpu.vector_store %arg19[%c0_46, %c0_47], %64 {strides = array<i32>} : memref<1x128xf32, #tpu.memory_space<vmem>>, vector<1x128xf32>,
    } else {
    }
    %c0 = arith.constant 0 : index
    %c0_2 = arith.constant 0 : index
    %5 = vector.load %arg3[%c0, %c0_2] : memref<32x32xi8, #tpu.memory_space<vmem>>, vector<32x32xi8>
    %6 = arith.sitofp %5 : vector<32x32xi8> to vector<32x32xf32>
    %7 = arith.truncf %6 : vector<32x32xf32> to vector<32x32xbf16>
    %c0_3 = arith.constant 0 : index
    %c0_4 = arith.constant 0 : index
    %8 = vector.load %arg16[%c0_3, %c0_4] : memref<32x128xbf16, #tpu.memory_space<vmem>>, vector<32x128xbf16>
    %cst = arith.constant dense<0.000000e+00> : vector<32x128xf32>
    %9 = tpu.matmul %7, %8, %cst {dimension_numbers = #tpu.dot_dimension_numbers<[1], [0], [0], [1], [0, 0, 1, 1], [], []>} : vector<32x32xbf16>, vector<32x128xbf16>, vector<32x128xf32> -> vector<32x128xf32>
    %c0_5 = arith.constant 0 : index
    %c0_6 = arith.constant 0 : index
    %c0_7 = arith.constant 0 : index
    %10 = vector.load %arg4[%c0_5, %c0_6, %c0_7] : memref<1x32x128xbf16, #tpu.memory_space<vmem>>, vector<1x32x128xbf16>
    %11 = vector.shape_cast %10 : vector<1x32x128xbf16> to vector<32x128xbf16>
    %12 = arith.extf %11 : vector<32x128xbf16> to vector<32x128xf32>
    %13 = arith.addf %9, %12 : vector<32x128xf32>
    %14 = arith.truncf %13 : vector<32x128xf32> to vector<32x128xbf16>
    %c0_8 = arith.constant 0 : index
    %c0_9 = arith.constant 0 : index
    %c0_10 = arith.constant 0 : index
    %15 = vector.load %arg5[%c0_8, %c0_9, %c0_10] : memref<1x128x128xbf16, #tpu.memory_space<vmem>>, vector<1x128x128xbf16>
    %16 = vector.shape_cast %15 : vector<1x128x128xbf16> to vector<128x128xbf16>
    %cst_11 = arith.constant dense<0.000000e+00> : vector<32x128xf32>
    %17 = tpu.matmul %14, %16, %cst_11 {dimension_numbers = #tpu.dot_dimension_numbers<[1], [0], [0], [1], [0, 0, 1, 1], [], []>} : vector<32x128xbf16>, vector<128x128xbf16>, vector<32x128xf32> -> vector<32x128xf32>
    %c0_12 = arith.constant 0 : index
    %c0_13 = arith.constant 0 : index
    %c0_14 = arith.constant 0 : index
    %18 = vector.load %arg6[%c0_12, %c0_13, %c0_14] : memref<1x1x128xf32, #tpu.memory_space<vmem>>, vector<1x1x128xf32>
    %19 = vector.shape_cast %18 : vector<1x1x128xf32> to vector<1x128xf32>
    %20 = vector.broadcast %19 : vector<1x128xf32> to vector<32x128xf32>
    %21 = arith.addf %17, %20 : vector<32x128xf32>
    %cst_15 = arith.constant 0.000000e+00 : f32
    %22 = vector.broadcast %cst_15 : f32 to vector<32x128xf32>
    %23 = arith.maximumf %21, %22 : vector<32x128xf32>
    %24 = arith.truncf %23 : vector<32x128xf32> to vector<32x128xbf16>
    %c0_16 = arith.constant 0 : index
    %c0_17 = arith.constant 0 : index
    %c0_18 = arith.constant 0 : index
    %25 = vector.load %arg7[%c0_16, %c0_17, %c0_18] : memref<1x128x128xbf16, #tpu.memory_space<vmem>>, vector<1x128x128xbf16>
    %26 = vector.shape_cast %25 : vector<1x128x128xbf16> to vector<128x128xbf16>
    %cst_19 = arith.constant dense<0.000000e+00> : vector<32x128xf32>
    %27 = tpu.matmul %24, %26, %cst_19 {dimension_numbers = #tpu.dot_dimension_numbers<[1], [0], [0], [1], [0, 0, 1, 1], [], []>} : vector<32x128xbf16>, vector<128x128xbf16>, vector<32x128xf32> -> vector<32x128xf32>
    %c0_20 = arith.constant 0 : index
    %c0_21 = arith.constant 0 : index
    %c0_22 = arith.constant 0 : index
    %28 = vector.load %arg8[%c0_20, %c0_21, %c0_22] : memref<1x1x128xf32, #tpu.memory_space<vmem>>, vector<1x1x128xf32>
    %29 = vector.shape_cast %28 : vector<1x1x128xf32> to vector<1x128xf32>
    %30 = vector.broadcast %29 : vector<1x128xf32> to vector<32x128xf32>
    %31 = arith.addf %27, %30 : vector<32x128xf32>
    %c32_i32 = arith.constant 32 : i32
    %32 = arith.muli %arg1, %c32_i32 : i32
    %33 = tpu.assume_multiple %32, 32 : i32
    %34 = arith.index_cast %33 : i32 to index
    %c0_23 = arith.constant 0 : index
    %35 = vector.load %arg17[%34, %c0_23] : memref<32x128xf32, #tpu.memory_space<vmem>>, vector<32x128xf32>
    tpu.vector_store %arg17[%34, %c0_23], %31 {strides = array<i32>} : memref<32x128xf32, #tpu.memory_space<vmem>>, vector<32x128xf32>,
    %36 = tpu.iota {dimensions = array<i32: 1>} : vector<1x32xi32>
    %37 = vector.broadcast %33 : i32 to vector<1x32xi32>
    %38 = arith.addi %37, %36 : vector<1x32xi32>
    %c8_i32 = arith.constant 8 : i32
    %39 = vector.broadcast %c8_i32 : i32 to vector<1x32xi32>
    %40 = arith.cmpi slt, %38, %39 : vector<1x32xi32>
    %41 = arith.extui %40 : vector<1x32xi1> to vector<1x32xi32>
    %42 = arith.sitofp %41 : vector<1x32xi32> to vector<1x32xf32>
    %c0_24 = arith.constant 0 : index
    %c0_25 = arith.constant 0 : index
    %43 = vector.load %arg18[%c0_24, %c0_25] : memref<1x128xf32, #tpu.memory_space<vmem>>, vector<1x128xf32>
    %cst_26 = arith.constant dense<0.000000e+00> : vector<1x128xf32>
    %44 = tpu.matmul %42, %31, %cst_26 {dimension_numbers = #tpu.dot_dimension_numbers<[1], [0], [0], [1], [0, 0, 1, 1], [], []>} : vector<1x32xf32>, vector<32x128xf32>, vector<1x128xf32> -> vector<1x128xf32>
    %45 = arith.addf %43, %44 : vector<1x128xf32>
    %c0_27 = arith.constant 0 : index
    %c0_28 = arith.constant 0 : index
    %46 = vector.load %arg18[%c0_27, %c0_28] : memref<1x128xf32, #tpu.memory_space<vmem>>, vector<1x128xf32>
    tpu.vector_store %arg18[%c0_27, %c0_28], %45 {strides = array<i32>} : memref<1x128xf32, #tpu.memory_space<vmem>>, vector<1x128xf32>,
    %c0_29 = arith.constant 0 : index
    %c0_30 = arith.constant 0 : index
    %47 = vector.load %arg19[%c0_29, %c0_30] : memref<1x128xf32, #tpu.memory_space<vmem>>, vector<1x128xf32>
    %48 = arith.mulf %31, %31 : vector<32x128xf32>
    %cst_31 = arith.constant dense<0.000000e+00> : vector<1x128xf32>
    %49 = tpu.matmul %42, %48, %cst_31 {dimension_numbers = #tpu.dot_dimension_numbers<[1], [0], [0], [1], [0, 0, 1, 1], [], []>} : vector<1x32xf32>, vector<32x128xf32>, vector<1x128xf32> -> vector<1x128xf32>
    %50 = arith.addf %47, %49 : vector<1x128xf32>
    %c0_32 = arith.constant 0 : index
    %c0_33 = arith.constant 0 : index
    %51 = vector.load %arg19[%c0_32, %c0_33] : memref<1x128xf32, #tpu.memory_space<vmem>>, vector<1x128xf32>
    tpu.vector_store %arg19[%c0_32, %c0_33], %50 {strides = array<i32>} : memref<1x128xf32, #tpu.memory_space<vmem>>, vector<1x128xf32>,
    %c0_i32_34 = arith.constant 0 : i32
    %52 = arith.cmpi eq, %arg1, %c0_i32_34 : i32
    %53 = arith.extui %52 : i1 to i32
    %c0_i32_35 = arith.constant 0 : i32
    %54 = arith.cmpi ne, %53, %c0_i32_35 : i32
    scf.if %54 {
      %c0_38 = arith.constant 0 : index
      %c0_39 = arith.constant 0 : index
      %60 = vector.load %arg18[%c0_38, %c0_39] : memref<1x128xf32, #tpu.memory_space<vmem>>, vector<1x128xf32>
      %cst_40 = arith.constant 1.250000e-01 : f32
      %61 = vector.broadcast %cst_40 : f32 to vector<1x128xf32>
      %62 = arith.mulf %60, %61 : vector<1x128xf32>
      %c0_41 = arith.constant 0 : index
      %c0_42 = arith.constant 0 : index
      %63 = vector.load %arg19[%c0_41, %c0_42] : memref<1x128xf32, #tpu.memory_space<vmem>>, vector<1x128xf32>
      %cst_43 = arith.constant 1.250000e-01 : f32
      %64 = vector.broadcast %cst_43 : f32 to vector<1x128xf32>
      %65 = arith.mulf %63, %64 : vector<1x128xf32>
      %66 = arith.mulf %62, %62 : vector<1x128xf32>
      %67 = arith.subf %65, %66 : vector<1x128xf32>
      %cst_44 = arith.constant 0.000000e+00 : f32
      %68 = vector.broadcast %cst_44 : f32 to vector<1x128xf32>
      %69 = arith.maximumf %67, %68 : vector<1x128xf32>
      %c0_45 = arith.constant 0 : index
      %c0_46 = arith.constant 0 : index
      %c0_47 = arith.constant 0 : index
      %70 = vector.load %arg9[%c0_45, %c0_46, %c0_47] : memref<1x1x128xf32, #tpu.memory_space<vmem>>, vector<1x1x128xf32>
      %71 = vector.shape_cast %70 : vector<1x1x128xf32> to vector<1x128xf32>
      %cst_48 = arith.constant 9.99999974E-6 : f32
      %72 = vector.broadcast %cst_48 : f32 to vector<1x128xf32>
      %73 = arith.addf %69, %72 : vector<1x128xf32>
      %74 = math.rsqrt %73 : vector<1x128xf32>
      %75 = arith.mulf %71, %74 : vector<1x128xf32>
      %c0_49 = arith.constant 0 : index
      %c0_50 = arith.constant 0 : index
      %c0_51 = arith.constant 0 : index
      %76 = vector.load %arg10[%c0_49, %c0_50, %c0_51] : memref<1x1x128xf32, #tpu.memory_space<vmem>>, vector<1x1x128xf32>
      %77 = vector.shape_cast %76 : vector<1x1x128xf32> to vector<1x128xf32>
      %78 = arith.mulf %62, %75 : vector<1x128xf32>
      %79 = arith.subf %77, %78 : vector<1x128xf32>
      %c0_52 = arith.constant 0 : index
      %c0_53 = arith.constant 0 : index
      %80 = vector.load %arg17[%c0_52, %c0_53] : memref<32x128xf32, #tpu.memory_space<vmem>>, vector<32x128xf32>
      %81 = vector.broadcast %75 : vector<1x128xf32> to vector<32x128xf32>
      %82 = arith.mulf %80, %81 : vector<32x128xf32>
      %83 = vector.broadcast %79 : vector<1x128xf32> to vector<32x128xf32>
      %84 = arith.addf %82, %83 : vector<32x128xf32>
      %c1_i32_54 = arith.constant 1 : i32
      %85 = arith.cmpi eq, %arg0, %c1_i32_54 : i32
      %cst_55 = arith.constant 0.000000e+00 : f32
      %86 = vector.broadcast %cst_55 : f32 to vector<32x128xf32>
      %87 = arith.maximumf %84, %86 : vector<32x128xf32>
      %88 = arith.select %85, %84, %87 : vector<32x128xf32>
      %89 = arith.truncf %88 : vector<32x128xf32> to vector<32x128xbf16>
      %c0_56 = arith.constant 0 : index
      %c0_57 = arith.constant 0 : index
      %90 = vector.load %arg16[%c0_56, %c0_57] : memref<32x128xbf16, #tpu.memory_space<vmem>>, vector<32x128xbf16>
      tpu.vector_store %arg16[%c0_56, %c0_57], %89 {strides = array<i32>} : memref<32x128xbf16, #tpu.memory_space<vmem>>, vector<32x128xbf16>,
      %cst_58 = arith.constant 0.000000e+00 : f32
      %91 = vector.broadcast %cst_58 : f32 to vector<1x128xf32>
      %c0_59 = arith.constant 0 : index
      %c0_60 = arith.constant 0 : index
      %92 = vector.load %arg18[%c0_59, %c0_60] : memref<1x128xf32, #tpu.memory_space<vmem>>, vector<1x128xf32>
      tpu.vector_store %arg18[%c0_59, %c0_60], %91 {strides = array<i32>} : memref<1x128xf32, #tpu.memory_space<vmem>>, vector<1x128xf32>,
      %cst_61 = arith.constant 0.000000e+00 : f32
      %93 = vector.broadcast %cst_61 : f32 to vector<1x128xf32>
      %c0_62 = arith.constant 0 : index
      %c0_63 = arith.constant 0 : index
      %94 = vector.load %arg19[%c0_62, %c0_63] : memref<1x128xf32, #tpu.memory_space<vmem>>, vector<1x128xf32>
      tpu.vector_store %arg19[%c0_62, %c0_63], %93 {strides = array<i32>} : memref<1x128xf32, #tpu.memory_space<vmem>>, vector<1x128xf32>,
    } else {
    }
    %c1_i32 = arith.constant 1 : i32
    %55 = arith.cmpi eq, %arg0, %c1_i32 : i32
    %c0_i32_36 = arith.constant 0 : i32
    %56 = arith.cmpi eq, %arg1, %c0_i32_36 : i32
    %57 = arith.andi %55, %56 : i1
    %58 = arith.extui %57 : i1 to i32
    %c0_i32_37 = arith.constant 0 : i32
    %59 = arith.cmpi ne, %58, %c0_i32_37 : i32
    scf.if %59 {
      %c0_38 = arith.constant 0 : index
      %c0_39 = arith.constant 0 : index
      %60 = vector.load %arg11[%c0_38, %c0_39] : memref<8x32xbf16, #tpu.memory_space<vmem>>, vector<8x32xbf16>
      %c0_40 = arith.constant 0 : index
      %c0_41 = arith.constant 0 : index
      %61 = vector.load %arg16[%c0_40, %c0_41] : memref<32x128xbf16, #tpu.memory_space<vmem>>, vector<32x128xbf16>
      %cst_42 = arith.constant dense<0.000000e+00> : vector<8x128xf32>
      %62 = tpu.matmul %60, %61, %cst_42 {dimension_numbers = #tpu.dot_dimension_numbers<[1], [0], [0], [1], [0, 0, 1, 1], [], []>} : vector<8x32xbf16>, vector<32x128xbf16>, vector<8x128xf32> -> vector<8x128xf32>
      %c0_43 = arith.constant 0 : index
      %c0_44 = arith.constant 0 : index
      %63 = vector.load %arg12[%c0_43, %c0_44] : memref<8x1xf32, #tpu.memory_space<vmem>>, vector<8x1xf32>
      %64 = vector.broadcast %63 : vector<8x1xf32> to vector<8x128xf32>
      %65 = arith.mulf %62, %64 : vector<8x128xf32>
      %66 = arith.truncf %65 : vector<8x128xf32> to vector<8x128xbf16>
      %c0_45 = arith.constant 0 : index
      %c0_46 = arith.constant 0 : index
      %67 = vector.load %arg13[%c0_45, %c0_46] : memref<128x128xbf16, #tpu.memory_space<vmem>>, vector<128x128xbf16>
      %cst_47 = arith.constant dense<0.000000e+00> : vector<8x128xf32>
      %68 = tpu.matmul %66, %67, %cst_47 {dimension_numbers = #tpu.dot_dimension_numbers<[1], [0], [0], [1], [0, 0, 1, 1], [], []>} : vector<8x128xbf16>, vector<128x128xbf16>, vector<8x128xf32> -> vector<8x128xf32>
      %c0_48 = arith.constant 0 : index
      %c0_49 = arith.constant 0 : index
      %69 = vector.load %arg14[%c0_48, %c0_49] : memref<1x128xf32, #tpu.memory_space<vmem>>, vector<1x128xf32>
      %70 = vector.broadcast %69 : vector<1x128xf32> to vector<8x128xf32>
      %71 = arith.addf %68, %70 : vector<8x128xf32>
      %c0_50 = arith.constant 0 : index
      %c0_51 = arith.constant 0 : index
      %72 = vector.load %arg15[%c0_50, %c0_51] : memref<8x128xf32, #tpu.memory_space<vmem>>, vector<8x128xf32>
      tpu.vector_store %arg15[%c0_50, %c0_51], %71 {strides = array<i32>} : memref<8x128xf32, #tpu.memory_space<vmem>>, vector<8x128xf32>,
    } else {
    }
    return
  }
  func.func @transform_0(%arg0: i32, %arg1: i32) -> (i32, i32) {
    %c0_i32 = arith.constant 0 : i32
    %c0_i32_0 = arith.constant 0 : i32
    %c0_i32_1 = arith.constant 0 : i32
    return %c0_i32, %c0_i32_0 : i32, i32
  }
  func.func @transform_1(%arg0: i32, %arg1: i32) -> (i32, i32) {
    %c0_i32 = arith.constant 0 : i32
    %c0_i32_0 = arith.constant 0 : i32
    return %arg1, %c0_i32 : i32, i32
  }
  func.func @transform_2(%arg0: i32, %arg1: i32) -> (i32, i32, i32) {
    %c0_i32 = arith.constant 0 : i32
    %c0_i32_0 = arith.constant 0 : i32
    return %arg0, %arg1, %c0_i32 : i32, i32, i32
  }
  func.func @transform_3(%arg0: i32, %arg1: i32) -> (i32, i32, i32) {
    %c0_i32 = arith.constant 0 : i32
    %c0_i32_0 = arith.constant 0 : i32
    %c0_i32_1 = arith.constant 0 : i32
    return %arg0, %c0_i32, %c0_i32_0 : i32, i32, i32
  }
  func.func @transform_4(%arg0: i32, %arg1: i32) -> (i32, i32, i32) {
    %c0_i32 = arith.constant 0 : i32
    %c0_i32_0 = arith.constant 0 : i32
    %c0_i32_1 = arith.constant 0 : i32
    return %arg0, %c0_i32, %c0_i32_0 : i32, i32, i32
  }
  func.func @transform_5(%arg0: i32, %arg1: i32) -> (i32, i32, i32) {
    %c0_i32 = arith.constant 0 : i32
    %c0_i32_0 = arith.constant 0 : i32
    %c0_i32_1 = arith.constant 0 : i32
    return %arg0, %c0_i32, %c0_i32_0 : i32, i32, i32
  }
  func.func @transform_6(%arg0: i32, %arg1: i32) -> (i32, i32, i32) {
    %c0_i32 = arith.constant 0 : i32
    %c0_i32_0 = arith.constant 0 : i32
    %c0_i32_1 = arith.constant 0 : i32
    return %arg0, %c0_i32, %c0_i32_0 : i32, i32, i32
  }
  func.func @transform_7(%arg0: i32, %arg1: i32) -> (i32, i32, i32) {
    %c0_i32 = arith.constant 0 : i32
    %c0_i32_0 = arith.constant 0 : i32
    %c0_i32_1 = arith.constant 0 : i32
    return %arg0, %c0_i32, %c0_i32_0 : i32, i32, i32
  }
  func.func @transform_8(%arg0: i32, %arg1: i32) -> (i32, i32, i32) {
    %c0_i32 = arith.constant 0 : i32
    %c0_i32_0 = arith.constant 0 : i32
    %c0_i32_1 = arith.constant 0 : i32
    return %arg0, %c0_i32, %c0_i32_0 : i32, i32, i32
  }
  func.func @transform_9(%arg0: i32, %arg1: i32) -> (i32, i32) {
    %c0_i32 = arith.constant 0 : i32
    %c0_i32_0 = arith.constant 0 : i32
    %c0_i32_1 = arith.constant 0 : i32
    return %c0_i32, %c0_i32_0 : i32, i32
  }
  func.func @transform_10(%arg0: i32, %arg1: i32) -> (i32, i32) {
    %c0_i32 = arith.constant 0 : i32
    %c0_i32_0 = arith.constant 0 : i32
    %c0_i32_1 = arith.constant 0 : i32
    return %c0_i32, %c0_i32_0 : i32, i32
  }
  func.func @transform_11(%arg0: i32, %arg1: i32) -> (i32, i32) {
    %c0_i32 = arith.constant 0 : i32
    %c0_i32_0 = arith.constant 0 : i32
    %c0_i32_1 = arith.constant 0 : i32
    return %c0_i32, %c0_i32_0 : i32, i32
  }
  func.func @transform_12(%arg0: i32, %arg1: i32) -> (i32, i32) {
    %c0_i32 = arith.constant 0 : i32
    %c0_i32_0 = arith.constant 0 : i32
    %c0_i32_1 = arith.constant 0 : i32
    return %c0_i32, %c0_i32_0 : i32, i32
  }
  func.func @transform_13(%arg0: i32, %arg1: i32) -> (i32, i32) {
    %c0_i32 = arith.constant 0 : i32
    %c0_i32_0 = arith.constant 0 : i32
    %c0_i32_1 = arith.constant 0 : i32
    return %c0_i32, %c0_i32_0 : i32, i32
  }
}

</mosaic_0001>

<llo_original>
// kernel: tpu_custom_call.1
$region0: #{tpu_custom_call.1}
  #allocation0 [shape = 'u32[]', space=smem, size = 0x4, offset = 0x4, fixed_abs, tag = 'smem constant byte address 0x4 - core index']
  #allocation1 [shape = 'u32[144,128]{1,0:T(1,128)}', space=vmem, size = 0x12000, scoped, tag = 'internal scratch']
  #allocation2 [shape = 'bf16[32,128]{1,0:T(16,128)(2,1)}', space=vmem, size = 0x2000, scoped, tag = 'scratch operand']
  #allocation3 [shape = 'f32[32,128]{1,0:T(8,128)}', space=vmem, size = 0x4000, scoped, tag = 'scratch operand']
  #allocation4 [shape = 'f32[1,128]{1,0:T(1,128)}', space=vmem, size = 0x200, scoped, tag = 'scratch operand']
  #allocation5 [shape = 'f32[1,128]{1,0:T(1,128)}', space=vmem, size = 0x200, scoped, tag = 'scratch operand']
  %s0 = inlined_call_operand.hbm [shape: bf16[32,128], index: 0, kind: input, shape index: {}]
  %s1 = inlined_call_operand.vmem [shape: s8[32,32], index: 1, kind: input, shape index: {}]
  %s2 = inlined_call_operand.hbm [shape: bf16[2,32,128], index: 2, kind: input, shape index: {}]
  %s3 = inlined_call_operand.hbm [shape: bf16[2,128,128], index: 3, kind: input, shape index: {}]
  %s4 = inlined_call_operand.vmem [shape: f32[2,1,128], index: 4, kind: input, shape index: {}]
  %s5 = inlined_call_operand.hbm [shape: bf16[2,128,128], index: 5, kind: input, shape index: {}]
  %s6 = inlined_call_operand.vmem [shape: f32[2,1,128], index: 6, kind: input, shape index: {}]
  %s7 = inlined_call_operand.vmem [shape: f32[2,1,128], index: 7, kind: input, shape index: {}]
  %s8 = inlined_call_operand.vmem [shape: f32[2,1,128], index: 8, kind: input, shape index: {}]
  %s9 = inlined_call_operand.vmem [shape: bf16[8,32], index: 9, kind: input, shape index: {}]
  %s10 = inlined_call_operand.vmem [shape: f32[8,1], index: 10, kind: input, shape index: {}]
  %s11 = inlined_call_operand.hbm [shape: bf16[128,128], index: 11, kind: input, shape index: {}]
  %s12 = inlined_call_operand.vmem [shape: f32[1,128], index: 12, kind: input, shape index: {}]
  %s13 = inlined_call_operand.hbm [shape: f32[8,128], index: 13, kind: output, shape index: {}]
  %s14 = sld [smem:[#allocation0]]
  $region117: #{tpu_custom_call.1} parent=0
    _
  %s16 = ssub.s32 1, %s14
  %s17 = scalar_select 0, %s16, %s14
  $region1: #{tpu_custom_call.1} parent=0
    #allocation6 [shape = 'u8[8192]{0}', space=vmem, size = 0x2000, scoped, tag = 'input window, operand 0, single buffered']
    #allocation7 [shape = 's32[2]{0}', space=sflag, size = 0x8, scoped, tag = 'scoped memory for tpu_custom_call.1']
    #allocation8 [shape = 's32[2]{0}', space=sflag, size = 0x8, scoped, tag = 'scoped memory for tpu_custom_call.1']
    #allocation9 [shape = 'u8[16384]{0}', space=vmem, size = 0x4000, scoped, tag = 'input window, operand 2']
    #allocation10 [shape = 's32[2]{0}', space=sflag, size = 0x8, scoped, tag = 'scoped memory for tpu_custom_call.1']
    #allocation11 [shape = 'u8[65536]{0}', space=vmem, size = 0x10000, scoped, tag = 'input window, operand 3']
    #allocation12 [shape = 'u8[65536]{0}', space=vmem, size = 0x10000, scoped, tag = 'input window, operand 5']
    #allocation13 [shape = 's32[2]{0}', space=sflag, size = 0x8, scoped, tag = 'scoped memory for tpu_custom_call.1']
    #allocation14 [shape = 'u8[32768]{0}', space=vmem, size = 0x8000, scoped, tag = 'input window, operand 11, single buffered']
    #allocation15 [shape = 'u8[4096]{0}', space=vmem, size = 0x1000, scoped, tag = 'output window, operand 0, single buffered']
    %18 = vsyncpa [#allocation7], 0
    %19 = vsyncpa [#allocation10], 0
    %s20 = scalar_lea.sflag [#allocation10], 1
    %21 = vsyncpa %s20, 0
    %22 = vsyncpa [#allocation13], 0
    %s23 = scalar_lea.sflag [#allocation13], 1
    %24 = vsyncpa %s23, 0
    %25 = vsyncpa [#allocation8], 0
    loop: start=0, step=1, limit=4
    $region2: #{tpu_custom_call.1} parent=1 // loop_pre_header
      _
    $region3: #{tpu_custom_call.1} parent=1 // loop_header
      %s27 = sphi 0, %s31
      %p28 = scmp.ge.s32.totalorder %s27, 4
      %s34 = sphi 0, %s46
      %s35 = sphi 0, %s42
      %s36 = sphi 0, %s34
      %s37 = sphi 0, %s35
      %s38 = sphi 0, %s36
      %s39 = sphi 0, %s37
      %s47 = sphi 0, %s47
      %s49 = sphi 0, %s47
      %s50 = sphi 0, %s49
      %s64 = sphi 0, %s50
      %s70 = sphi 0, %s72
      %s73 = sphi 0, %s70
      %s74 = sphi 0, %s73
      %s90 = sphi 0, %s74
      %s98 = sphi 0, %s100
      %s101 = sphi 0, %s98
      %s102 = sphi 0, %s101
      %s118 = sphi 0, %s102
      %s124 = sphi 0, %s126
      %s127 = sphi 0, %s124
      %s128 = sphi 0, %s127
      %s144 = sphi 0, %s128
      %s150 = sphi 0, %s152
      %s153 = sphi 0, %s150
      %s154 = sphi 0, %s153
      %s170 = sphi 0, %s154
      %s176 = sphi 0, %s178
      %s179 = sphi 0, %s176
      %s180 = sphi 0, %s179
      %s196 = sphi 0, %s180
      %s202 = sphi 0, %s204
      %s205 = sphi 0, %s202
      %s206 = sphi 0, %s205
      %s222 = sphi 0, %s206
      %s228 = sphi 0, %s230
      %s231 = sphi 0, %s228
      %s232 = sphi 0, %s231
      %s248 = sphi 0, %s232
      %s254 = sphi 0, %s256
      %s257 = sphi 0, %s254
      %s258 = sphi 0, %s257
      %s274 = sphi 0, %s258
      %s278 = sphi 0, %s278
      %s280 = sphi 0, %s278
      %s281 = sphi 0, %s280
      %s295 = sphi 0, %s281
      %s299 = sphi 0, %s299
      %s301 = sphi 0, %s299
      %s302 = sphi 0, %s301
      %s316 = sphi 0, %s302
      %s320 = sphi 0, %s320
      %s322 = sphi 0, %s320
      %s323 = sphi 0, %s322
      %s337 = sphi 0, %s323
      %s341 = sphi 0, %s341
      %s343 = sphi 0, %s341
      %s344 = sphi 0, %s343
      %s358 = sphi 0, %s344
      %s362 = sphi 0, %s362
      %s364 = sphi 0, %s362
      %s365 = sphi 0, %s364
      %s379 = sphi 0, %s365
    $region4: #{tpu_custom_call.1} parent=1 // loop_header_branch
      %30 = sbr.rel (%p28) target = $region8
    $region5: #{tpu_custom_call.1} parent=1 // loop_body
      %s32 = ssub.s32 %s27, 1
      %s33 = ssub.s32 %s27, 2
      %s40 = sadd.s32 1, %s35
      %p41 = scmp.ge.s32.totalorder %s40, 1
      %s42 = scalar_select %p41, 0, %s40
      %s43 = sadd.s32 1, %s34
      %s44 = scalar_select %p41, %s43, %s34
      %p45 = scmp.ge.s32.totalorder %s44, 2
      %s46 = scalar_select %p45, 0, %s44
      %s48 = sadd.s32 %s47, 1
      %p51 = scmp.eq.s32.totalorder %s27, 1
      %p52 = scmp.ne.s32.totalorder %s47, %s49
      %p53 = scmp.eq.s32.totalorder %s27, 0
      %p54 = por %p52, %p53
      %p55 = scmp.ne.s32.totalorder %s47, %s49
      %p56 = scmp.eq.s32.totalorder %s32, 1
      %p57 = por %p55, %p56
      %p58 = scmp.ne.s32.totalorder %s49, %s50
      %p59 = scmp.eq.s32.totalorder %s32, 0
      %p60 = por %p58, %p59
      %p61 = scmp.ne.s32.totalorder %s49, %s50
      %p62 = scmp.eq.s32.totalorder %s33, 1
      %p63 = por %p61, %p62
      %p65 = scmp.ne.s32.totalorder %s50, %s64
      %p66 = scmp.eq.s32.totalorder %s33, 0
      %p67 = por %p65, %p66
      %s68 = ssub.s32 %s35, %s42
      %p69 = scmp.eq.s32.totalorder %s68, 0
      %s71 = sadd.s32 %s70, 1
      %s72 = scalar_select %p69, %s70, %s71
      %p75 = pneg %p69
      %p76 = scmp.eq.s32.totalorder %s27, 1
      %p77 = por %p75, %p76
      %p78 = scmp.ne.s32.totalorder %s70, %s73
      %p79 = scmp.eq.s32.totalorder %s27, 0
      %p80 = por %p78, %p79
      %p81 = scmp.ne.s32.totalorder %s70, %s73
      %p82 = scmp.eq.s32.totalorder %s32, 1
      %p83 = por %p81, %p82
      %p84 = scmp.ne.s32.totalorder %s73, %s74
      %p85 = scmp.eq.s32.totalorder %s32, 0
      %p86 = por %p84, %p85
      %p87 = scmp.ne.s32.totalorder %s73, %s74
      %p88 = scmp.eq.s32.totalorder %s33, 1
      %p89 = por %p87, %p88
      %p91 = scmp.ne.s32.totalorder %s74, %s90
      %p92 = scmp.eq.s32.totalorder %s33, 0
      %p93 = por %p91, %p92
      %s94 = ssub.s32 %s34, %s46
      %s95 = ssub.s32 %s35, %s42
      %s96 = sor.u32 %s94, %s95
      %p97 = scmp.eq.s32.totalorder %s96, 0
      %s99 = sadd.s32 %s98, 1
      %s100 = scalar_select %p97, %s98, %s99
      %p103 = pneg %p97
      %p104 = scmp.eq.s32.totalorder %s27, 1
      %p105 = por %p103, %p104
      %p106 = scmp.ne.s32.totalorder %s98, %s101
      %p107 = scmp.eq.s32.totalorder %s27, 0
      %p108 = por %p106, %p107
      %p109 = scmp.ne.s32.totalorder %s98, %s101
      %p110 = scmp.eq.s32.totalorder %s32, 1
      %p111 = por %p109, %p110
      %p112 = scmp.ne.s32.totalorder %s101, %s102
      %p113 = scmp.eq.s32.totalorder %s32, 0
      %p114 = por %p112, %p113
      %p115 = scmp.ne.s32.totalorder %s101, %s102
      %p116 = scmp.eq.s32.totalorder %s33, 1
      %p117 = por %p115, %p116
      %p119 = scmp.ne.s32.totalorder %s102, %s118
      %p120 = scmp.eq.s32.totalorder %s33, 0
      %p121 = por %p119, %p120
      %s122 = ssub.s32 %s34, %s46
      %p123 = scmp.eq.s32.totalorder %s122, 0
      %s125 = sadd.s32 %s124, 1
      %s126 = scalar_select %p123, %s124, %s125
      %p129 = pneg %p123
      %p130 = scmp.eq.s32.totalorder %s27, 1
      %p131 = por %p129, %p130
      %p132 = scmp.ne.s32.totalorder %s124, %s127
      %p133 = scmp.eq.s32.totalorder %s27, 0
      %p134 = por %p132, %p133
      %p135 = scmp.ne.s32.totalorder %s124, %s127
      %p136 = scmp.eq.s32.totalorder %s32, 1
      %p137 = por %p135, %p136
      %p138 = scmp.ne.s32.totalorder %s127, %s128
      %p139 = scmp.eq.s32.totalorder %s32, 0
      %p140 = por %p138, %p139
      %p141 = scmp.ne.s32.totalorder %s127, %s128
      %p142 = scmp.eq.s32.totalorder %s33, 1
      %p143 = por %p141, %p142
      %p145 = scmp.ne.s32.totalorder %s128, %s144
      %p146 = scmp.eq.s32.totalorder %s33, 0
      %p147 = por %p145, %p146
      %s148 = ssub.s32 %s34, %s46
      %p149 = scmp.eq.s32.totalorder %s148, 0
      %s151 = sadd.s32 %s150, 1
      %s152 = scalar_select %p149, %s150, %s151
      %p155 = pneg %p149
      %p156 = scmp.eq.s32.totalorder %s27, 1
      %p157 = por %p155, %p156
      %p158 = scmp.ne.s32.totalorder %s150, %s153
      %p159 = scmp.eq.s32.totalorder %s27, 0
      %p160 = por %p158, %p159
      %p161 = scmp.ne.s32.totalorder %s150, %s153
      %p162 = scmp.eq.s32.totalorder %s32, 1
      %p163 = por %p161, %p162
      %p164 = scmp.ne.s32.totalorder %s153, %s154
      %p165 = scmp.eq.s32.totalorder %s32, 0
      %p166 = por %p164, %p165
      %p167 = scmp.ne.s32.totalorder %s153, %s154
      %p168 = scmp.eq.s32.totalorder %s33, 1
      %p169 = por %p167, %p168
      %p171 = scmp.ne.s32.totalorder %s154, %s170
      %p172 = scmp.eq.s32.totalorder %s33, 0
      %p173 = por %p171, %p172
      %s174 = ssub.s32 %s34, %s46
      %p175 = scmp.eq.s32.totalorder %s174, 0
      %s177 = sadd.s32 %s176, 1
      %s178 = scalar_select %p175, %s176, %s177
      %p181 = pneg %p175
      %p182 = scmp.eq.s32.totalorder %s27, 1
      %p183 = por %p181, %p182
      %p184 = scmp.ne.s32.totalorder %s176, %s179
      %p185 = scmp.eq.s32.totalorder %s27, 0
      %p186 = por %p184, %p185
      %p187 = scmp.ne.s32.totalorder %s176, %s179
      %p188 = scmp.eq.s32.totalorder %s32, 1
      %p189 = por %p187, %p188
      %p190 = scmp.ne.s32.totalorder %s179, %s180
      %p191 = scmp.eq.s32.totalorder %s32, 0
      %p192 = por %p190, %p191
      %p193 = scmp.ne.s32.totalorder %s179, %s180
      %p194 = scmp.eq.s32.totalorder %s33, 1
      %p195 = por %p193, %p194
      %p197 = scmp.ne.s32.totalorder %s180, %s196
      %p198 = scmp.eq.s32.totalorder %s33, 0
      %p199 = por %p197, %p198
      %s200 = ssub.s32 %s34, %s46
      %p201 = scmp.eq.s32.totalorder %s200, 0
      %s203 = sadd.s32 %s202, 1
      %s204 = scalar_select %p201, %s202, %s203
      %p207 = pneg %p201
      %p208 = scmp.eq.s32.totalorder %s27, 1
      %p209 = por %p207, %p208
      %p210 = scmp.ne.s32.totalorder %s202, %s205
      %p211 = scmp.eq.s32.totalorder %s27, 0
      %p212 = por %p210, %p211
      %p213 = scmp.ne.s32.totalorder %s202, %s205
      %p214 = scmp.eq.s32.totalorder %s32, 1
      %p215 = por %p213, %p214
      %p216 = scmp.ne.s32.totalorder %s205, %s206
      %p217 = scmp.eq.s32.totalorder %s32, 0
      %p218 = por %p216, %p217
      %p219 = scmp.ne.s32.totalorder %s205, %s206
      %p220 = scmp.eq.s32.totalorder %s33, 1
      %p221 = por %p219, %p220
      %p223 = scmp.ne.s32.totalorder %s206, %s222
      %p224 = scmp.eq.s32.totalorder %s33, 0
      %p225 = por %p223, %p224
      %s226 = ssub.s32 %s34, %s46
      %p227 = scmp.eq.s32.totalorder %s226, 0
      %s229 = sadd.s32 %s228, 1
      %s230 = scalar_select %p227, %s228, %s229
      %p233 = pneg %p227
      %p234 = scmp.eq.s32.totalorder %s27, 1
      %p235 = por %p233, %p234
      %p236 = scmp.ne.s32.totalorder %s228, %s231
      %p237 = scmp.eq.s32.totalorder %s27, 0
      %p238 = por %p236, %p237
      %p239 = scmp.ne.s32.totalorder %s228, %s231
      %p240 = scmp.eq.s32.totalorder %s32, 1
      %p241 = por %p239, %p240
      %p242 = scmp.ne.s32.totalorder %s231, %s232
      %p243 = scmp.eq.s32.totalorder %s32, 0
      %p244 = por %p242, %p243
      %p245 = scmp.ne.s32.totalorder %s231, %s232
      %p246 = scmp.eq.s32.totalorder %s33, 1
      %p247 = por %p245, %p246
      %p249 = scmp.ne.s32.totalorder %s232, %s248
      %p250 = scmp.eq.s32.totalorder %s33, 0
      %p251 = por %p249, %p250
      %s252 = ssub.s32 %s34, %s46
      %p253 = scmp.eq.s32.totalorder %s252, 0
      %s255 = sadd.s32 %s254, 1
      %s256 = scalar_select %p253, %s254, %s255
      %p259 = pneg %p253
      %p260 = scmp.eq.s32.totalorder %s27, 1
      %p261 = por %p259, %p260
      %p262 = scmp.ne.s32.totalorder %s254, %s257
      %p263 = scmp.eq.s32.totalorder %s27, 0
      %p264 = por %p262, %p263
      %p265 = scmp.ne.s32.totalorder %s254, %s257
      %p266 = scmp.eq.s32.totalorder %s32, 1
      %p267 = por %p265, %p266
      %p268 = scmp.ne.s32.totalorder %s257, %s258
      %p269 = scmp.eq.s32.totalorder %s32, 0
      %p270 = por %p268, %p269
      %p271 = scmp.ne.s32.totalorder %s257, %s258
      %p272 = scmp.eq.s32.totalorder %s33, 1
      %p273 = por %p271, %p272
      %p275 = scmp.ne.s32.totalorder %s258, %s274
      %p276 = scmp.eq.s32.totalorder %s33, 0
      %p277 = por %p275, %p276
      %s279 = sadd.s32 %s278, 1
      %p282 = scmp.eq.s32.totalorder %s27, 1
      %p283 = scmp.ne.s32.totalorder %s278, %s280
      %p284 = scmp.eq.s32.totalorder %s27, 0
      %p285 = por %p283, %p284
      %p286 = scmp.ne.s32.totalorder %s278, %s280
      %p287 = scmp.eq.s32.totalorder %s32, 1
      %p288 = por %p286, %p287
      %p289 = scmp.ne.s32.totalorder %s280, %s281
      %p290 = scmp.eq.s32.totalorder %s32, 0
      %p291 = por %p289, %p290
      %p292 = scmp.ne.s32.totalorder %s280, %s281
      %p293 = scmp.eq.s32.totalorder %s33, 1
      %p294 = por %p292, %p293
      %p296 = scmp.ne.s32.totalorder %s281, %s295
      %p297 = scmp.eq.s32.totalorder %s33, 0
      %p298 = por %p296, %p297
      %s300 = sadd.s32 %s299, 1
      %p303 = scmp.eq.s32.totalorder %s27, 1
      %p304 = scmp.ne.s32.totalorder %s299, %s301
      %p305 = scmp.eq.s32.totalorder %s27, 0
      %p306 = por %p304, %p305
      %p307 = scmp.ne.s32.totalorder %s299, %s301
      %p308 = scmp.eq.s32.totalorder %s32, 1
      %p309 = por %p307, %p308
      %p310 = scmp.ne.s32.totalorder %s301, %s302
      %p311 = scmp.eq.s32.totalorder %s32, 0
      %p312 = por %p310, %p311
      %p313 = scmp.ne.s32.totalorder %s301, %s302
      %p314 = scmp.eq.s32.totalorder %s33, 1
      %p315 = por %p313, %p314
      %p317 = scmp.ne.s32.totalorder %s302, %s316
      %p318 = scmp.eq.s32.totalorder %s33, 0
      %p319 = por %p317, %p318
      %s321 = sadd.s32 %s320, 1
      %p324 = scmp.eq.s32.totalorder %s27, 1
      %p325 = scmp.ne.s32.totalorder %s320, %s322
      %p326 = scmp.eq.s32.totalorder %s27, 0
      %p327 = por %p325, %p326
      %p328 = scmp.ne.s32.totalorder %s320, %s322
      %p329 = scmp.eq.s32.totalorder %s32, 1
      %p330 = por %p328, %p329
      %p331 = scmp.ne.s32.totalorder %s322, %s323
      %p332 = scmp.eq.s32.totalorder %s32, 0
      %p333 = por %p331, %p332
      %p334 = scmp.ne.s32.totalorder %s322, %s323
      %p335 = scmp.eq.s32.totalorder %s33, 1
      %p336 = por %p334, %p335
      %p338 = scmp.ne.s32.totalorder %s323, %s337
      %p339 = scmp.eq.s32.totalorder %s33, 0
      %p340 = por %p338, %p339
      %s342 = sadd.s32 %s341, 1
      %p345 = scmp.eq.s32.totalorder %s27, 1
      %p346 = scmp.ne.s32.totalorder %s341, %s343
      %p347 = scmp.eq.s32.totalorder %s27, 0
      %p348 = por %p346, %p347
      %p349 = scmp.ne.s32.totalorder %s341, %s343
      %p350 = scmp.eq.s32.totalorder %s32, 1
      %p351 = por %p349, %p350
      %p352 = scmp.ne.s32.totalorder %s343, %s344
      %p353 = scmp.eq.s32.totalorder %s32, 0
      %p354 = por %p352, %p353
      %p355 = scmp.ne.s32.totalorder %s343, %s344
      %p356 = scmp.eq.s32.totalorder %s33, 1
      %p357 = por %p355, %p356
      %p359 = scmp.ne.s32.totalorder %s344, %s358
      %p360 = scmp.eq.s32.totalorder %s33, 0
      %p361 = por %p359, %p360
      %s363 = sadd.s32 %s362, 1
      %p366 = scmp.eq.s32.totalorder %s27, 1
      %p367 = scmp.ne.s32.totalorder %s362, %s364
      %p368 = scmp.eq.s32.totalorder %s27, 0
      %p369 = por %p367, %p368
      %p370 = scmp.ne.s32.totalorder %s362, %s364
      %p371 = scmp.eq.s32.totalorder %s32, 1
      %p372 = por %p370, %p371
      %p373 = scmp.ne.s32.totalorder %s364, %s365
      %p374 = scmp.eq.s32.totalorder %s32, 0
      %p375 = por %p373, %p374
      %p376 = scmp.ne.s32.totalorder %s364, %s365
      %p377 = scmp.eq.s32.totalorder %s33, 1
      %p378 = por %p376, %p377
      %p380 = scmp.ne.s32.totalorder %s365, %s379
      %p381 = scmp.eq.s32.totalorder %s33, 0
      %p382 = por %p380, %p381
      %p383 = scmp.le.s32.totalorder 1, %s27
      %p384 = scmp.lt.s32.totalorder %s27, 3
      %p385 = pnand %p383, %p384
      %p386 = pneg %p385
      // Predicated region
      $region9: #{tpu_custom_call.1} parent=5 // pred_check
        _
      $region10: #{tpu_custom_call.1} parent=5 // pred_check_branch
        %388 = sbr.rel (%p385) target = $region12
      $region11: #{tpu_custom_call.1} parent=5 // pred_region
        %s389 = ssub.s32 %s27, 1
        // Predicated region
        $region13: #{tpu_custom_call.1} parent=11 // pred_check
          %p390 = pneg %p60
        $region14: #{tpu_custom_call.1} parent=11 // pred_check_branch
          %392 = sbr.rel (%p390) target = $region16
        $region15: #{tpu_custom_call.1} parent=11 // pred_region
          %s394 = ssub.s32 256, 256
          %395 = vsyncadd [#allocation7], %s394
          %s396 = sshll.u32 [#allocation6], 4
          %s397 = int_to_ptr.vmem [resolvable:$true] %s396
          %402 = dma.hbm_to_vmem [thread:$0]  %s0, 256, %s397, [#allocation7], 64, 64, 4
        $region16: #{tpu_custom_call.1} parent=11 // pred_fallthru
          _
        // Predicated region
        $region17: #{tpu_custom_call.1} parent=11 // pred_check
          %p403 = pneg %p86
        $region18: #{tpu_custom_call.1} parent=11 // pred_check_branch
          %405 = sbr.rel (%p403) target = $region20
        $region19: #{tpu_custom_call.1} parent=11 // pred_region
          %p406 = scmp.lt.s32.totalorder %s37, 0
          %s407 = scalar_select %p406, %s37, 0
          %s408 = smul.addr %s407, 8
          %s409 = scalar_lea.vmem %s1, %s408
        $region20: #{tpu_custom_call.1} parent=11 // pred_fallthru
          _
        // Predicated region
        $region21: #{tpu_custom_call.1} parent=11 // pred_check
          %p410 = pneg %p291
        $region22: #{tpu_custom_call.1} parent=11 // pred_check_branch
          %412 = sbr.rel (%p410) target = $region24
        $region23: #{tpu_custom_call.1} parent=11 // pred_region
          _
        $region24: #{tpu_custom_call.1} parent=11 // pred_fallthru
          _
        // Predicated region
        $region25: #{tpu_custom_call.1} parent=11 // pred_check
          %p413 = pneg %p312
        $region26: #{tpu_custom_call.1} parent=11 // pred_check_branch
          %415 = sbr.rel (%p413) target = $region28
        $region27: #{tpu_custom_call.1} parent=11 // pred_region
          _
        $region28: #{tpu_custom_call.1} parent=11 // pred_fallthru
          _
        // Predicated region
        $region29: #{tpu_custom_call.1} parent=11 // pred_check
          %p416 = pneg %p333
        $region30: #{tpu_custom_call.1} parent=11 // pred_check_branch
          %418 = sbr.rel (%p416) target = $region32
        $region31: #{tpu_custom_call.1} parent=11 // pred_region
          %s420 = ssub.s32 1024, 1024
          %421 = vsyncadd [#allocation13], %s420
          %s422 = sshll.u32 [#allocation14], 4
          %s423 = int_to_ptr.vmem [resolvable:$true] %s422
          %428 = dma.hbm_to_vmem [thread:$0]  %s11, 1024, %s423, [#allocation13], 64, 64, 4
        $region32: #{tpu_custom_call.1} parent=11 // pred_fallthru
          _
        // Predicated region
        $region33: #{tpu_custom_call.1} parent=11 // pred_check
          %p429 = pneg %p354
        $region34: #{tpu_custom_call.1} parent=11 // pred_check_branch
          %431 = sbr.rel (%p429) target = $region36
        $region35: #{tpu_custom_call.1} parent=11 // pred_region
          _
        $region36: #{tpu_custom_call.1} parent=11 // pred_fallthru
          _
      $region12: #{tpu_custom_call.1} parent=5 // pred_fallthru
        _
      %p432 = scmp.lt.s32.totalorder %s27, 2
      // Predicated region
      $region37: #{tpu_custom_call.1} parent=5 // pred_check
        %p433 = pneg %p432
      $region38: #{tpu_custom_call.1} parent=5 // pred_check_branch
        %435 = sbr.rel (%p433) target = $region40
      $region39: #{tpu_custom_call.1} parent=5 // pred_region
        // Predicated region
        $region41: #{tpu_custom_call.1} parent=39 // pred_check
          %p436 = pneg %p108
        $region42: #{tpu_custom_call.1} parent=39 // pred_check_branch
          %438 = sbr.rel (%p436) target = $region44
        $region43: #{tpu_custom_call.1} parent=39 // pred_region
          %s439 = sand.u32 %s27, 1
          %s440 = scalar_lea.sflag [#allocation10], %s439
          %s441 = sand.u32 %s98, 1
          %s442 = smul.addr %s441, 16
          %s443 = scalar_lea.vmem [#allocation9], %s442
          %s444 = smul.u32 4, %s35
          %s446 = ssub.s32 256, 256
          %447 = vsyncadd %s440, %s446
          %s448 = smul.addr %s34, 4
          %s449 = sadd.s32 %s444, %s448
          %s450 = smul.addr %s449, 64
          %s451 = scalar_lea.hbm %s2, %s450
          %s452 = sshll.u32 %s443, 4
          %s453 = int_to_ptr.vmem [resolvable:$true] %s452
          %458 = dma.hbm_to_vmem [thread:$0]  %s451, 256, %s453, %s440, 64, 64, 4
        $region44: #{tpu_custom_call.1} parent=39 // pred_fallthru
          _
        // Predicated region
        $region45: #{tpu_custom_call.1} parent=39 // pred_check
          %p459 = pneg %p134
        $region46: #{tpu_custom_call.1} parent=39 // pred_check_branch
          %461 = sbr.rel (%p459) target = $region48
        $region47: #{tpu_custom_call.1} parent=39 // pred_region
          %s462 = sand.u32 %s27, 1
          %s463 = scalar_lea.sflag [#allocation10], %s462
          %s464 = sand.u32 %s124, 1
          %s465 = smul.addr %s464, 64
          %s466 = scalar_lea.vmem [#allocation11], %s465
          %s468 = ssub.s32 1024, 1024
          %469 = vsyncadd %s463, %s468
          %s470 = smul.addr %s34, 16
          %s471 = smul.addr %s470, 64
          %s472 = scalar_lea.hbm %s3, %s471
          %s473 = sshll.u32 %s466, 4
          %s474 = int_to_ptr.vmem [resolvable:$true] %s473
          %479 = dma.hbm_to_vmem [thread:$0]  %s472, 1024, %s474, %s463, 64, 64, 4
        $region48: #{tpu_custom_call.1} parent=39 // pred_fallthru
          _
        // Predicated region
        $region49: #{tpu_custom_call.1} parent=39 // pred_check
          %p480 = pneg %p160
        $region50: #{tpu_custom_call.1} parent=39 // pred_check_branch
          %482 = sbr.rel (%p480) target = $region52
        $region51: #{tpu_custom_call.1} parent=39 // pred_region
          %p483 = scmp.lt.s32.totalorder %s34, 1
          %s484 = scalar_select %p483, %s34, 1
          %s485 = scalar_lea.vmem %s4, %s484
        $region52: #{tpu_custom_call.1} parent=39 // pred_fallthru
          _
        // Predicated region
        $region53: #{tpu_custom_call.1} parent=39 // pred_check
          %p486 = pneg %p186
        $region54: #{tpu_custom_call.1} parent=39 // pred_check_branch
          %488 = sbr.rel (%p486) target = $region56
        $region55: #{tpu_custom_call.1} parent=39 // pred_region
          %s489 = sand.u32 %s27, 1
          %s490 = scalar_lea.sflag [#allocation13], %s489
          %s491 = sand.u32 %s176, 1
          %s492 = smul.addr %s491, 64
          %s493 = scalar_lea.vmem [#allocation12], %s492
          %s495 = ssub.s32 1024, 1024
          %496 = vsyncadd %s490, %s495
          %s497 = smul.addr %s34, 16
          %s498 = smul.addr %s497, 64
          %s499 = scalar_lea.hbm %s5, %s498
          %s500 = sshll.u32 %s493, 4
          %s501 = int_to_ptr.vmem [resolvable:$true] %s500
          %506 = dma.hbm_to_vmem [thread:$0]  %s499, 1024, %s501, %s490, 64, 64, 4
        $region56: #{tpu_custom_call.1} parent=39 // pred_fallthru
          _
        // Predicated region
        $region57: #{tpu_custom_call.1} parent=39 // pred_check
          %p507 = pneg %p212
        $region58: #{tpu_custom_call.1} parent=39 // pred_check_branch
          %509 = sbr.rel (%p507) target = $region60
        $region59: #{tpu_custom_call.1} parent=39 // pred_region
          %p510 = scmp.lt.s32.totalorder %s34, 1
          %s511 = scalar_select %p510, %s34, 1
          %s512 = scalar_lea.vmem %s6, %s511
        $region60: #{tpu_custom_call.1} parent=39 // pred_fallthru
          _
        // Predicated region
        $region61: #{tpu_custom_call.1} parent=39 // pred_check
          %p513 = pneg %p238
        $region62: #{tpu_custom_call.1} parent=39 // pred_check_branch
          %515 = sbr.rel (%p513) target = $region64
        $region63: #{tpu_custom_call.1} parent=39 // pred_region
          %p516 = scmp.lt.s32.totalorder %s34, 1
          %s517 = scalar_select %p516, %s34, 1
          %s518 = scalar_lea.vmem %s7, %s517
        $region64: #{tpu_custom_call.1} parent=39 // pred_fallthru
          _
        // Predicated region
        $region65: #{tpu_custom_call.1} parent=39 // pred_check
          %p519 = pneg %p264
        $region66: #{tpu_custom_call.1} parent=39 // pred_check_branch
          %521 = sbr.rel (%p519) target = $region68
        $region67: #{tpu_custom_call.1} parent=39 // pred_region
          %p522 = scmp.lt.s32.totalorder %s34, 1
          %s523 = scalar_select %p522, %s34, 1
          %s524 = scalar_lea.vmem %s8, %s523
        $region68: #{tpu_custom_call.1} parent=39 // pred_fallthru
          _
      $region40: #{tpu_custom_call.1} parent=5 // pred_fallthru
        _
      %p525 = scmp.le.s32.totalorder 1, %s27
      %p526 = scmp.lt.s32.totalorder %s27, 3
      %p527 = pnand %p525, %p526
      %p528 = pneg %p527
      // Predicated region
      $region69: #{tpu_custom_call.1} parent=5 // pred_check
        _
      $region70: #{tpu_custom_call.1} parent=5 // pred_check_branch
        %530 = sbr.rel (%p527) target = $region72
      $region71: #{tpu_custom_call.1} parent=5 // pred_region
        %s531 = ssub.s32 %s27, 1
        // Predicated region
        $region73: #{tpu_custom_call.1} parent=71 // pred_check
          %p532 = pneg %p60
        $region74: #{tpu_custom_call.1} parent=71 // pred_check_branch
          %534 = sbr.rel (%p532) target = $region76
        $region75: #{tpu_custom_call.1} parent=71 // pred_region
          %535 = dma.done [#allocation7], 256
        $region76: #{tpu_custom_call.1} parent=71 // pred_fallthru
          _
        %s536 = sand.u32 %s32, 1
        %s537 = scalar_lea.sflag [#allocation10], %s536
        %s538 = sand.u32 %s101, 1
        %s539 = smul.addr %s538, 16
        %s540 = scalar_lea.vmem [#allocation9], %s539
        // Predicated region
        $region77: #{tpu_custom_call.1} parent=71 // pred_check
          %p541 = pneg %p114
        $region78: #{tpu_custom_call.1} parent=71 // pred_check_branch
          %543 = sbr.rel (%p541) target = $region80
        $region79: #{tpu_custom_call.1} parent=71 // pred_region
          %544 = dma.done %s537, 256
        $region80: #{tpu_custom_call.1} parent=71 // pred_fallthru
          _
        %s545 = sand.u32 %s32, 1
        %s546 = scalar_lea.sflag [#allocation10], %s545
        %s547 = sand.u32 %s127, 1
        %s548 = smul.addr %s547, 64
        %s549 = scalar_lea.vmem [#allocation11], %s548
        // Predicated region
        $region81: #{tpu_custom_call.1} parent=71 // pred_check
          %p550 = pneg %p140
        $region82: #{tpu_custom_call.1} parent=71 // pred_check_branch
          %552 = sbr.rel (%p550) target = $region84
        $region83: #{tpu_custom_call.1} parent=71 // pred_region
          %553 = dma.done %s546, 1024
        $region84: #{tpu_custom_call.1} parent=71 // pred_fallthru
          _
        %s554 = sand.u32 %s32, 1
        %s555 = scalar_lea.sflag [#allocation13], %s554
        %s556 = sand.u32 %s179, 1
        %s557 = smul.addr %s556, 64
        %s558 = scalar_lea.vmem [#allocation12], %s557
        // Predicated region
        $region85: #{tpu_custom_call.1} parent=71 // pred_check
          %p559 = pneg %p192
        $region86: #{tpu_custom_call.1} parent=71 // pred_check_branch
          %561 = sbr.rel (%p559) target = $region88
        $region87: #{tpu_custom_call.1} parent=71 // pred_region
          %562 = dma.done %s555, 1024
        $region88: #{tpu_custom_call.1} parent=71 // pred_fallthru
          _
        // Predicated region
        $region89: #{tpu_custom_call.1} parent=71 // pred_check
          %p563 = pneg %p333
        $region90: #{tpu_custom_call.1} parent=71 // pred_check_branch
          %565 = sbr.rel (%p563) target = $region92
        $region91: #{tpu_custom_call.1} parent=71 // pred_region
          %566 = dma.done [#allocation13], 1024
        $region92: #{tpu_custom_call.1} parent=71 // pred_fallthru
          _
        %p567 = pneg %p60
        %p568 = pneg %p57
        %p569 = scmp.lt.s32.totalorder %s37, 0
        %s570 = scalar_select %p569, %s37, 0
        %s571 = smul.addr %s570, 8
        %s572 = scalar_lea.vmem %s1, %s571
        %p573 = pneg %p86
        %p574 = pneg %p83
        %s575 = sand.u32 %s32, 1
        %s576 = scalar_lea.sflag [#allocation10], %s575
        %s577 = sand.u32 %s101, 1
        %s578 = smul.addr %s577, 16
        %s579 = scalar_lea.vmem [#allocation9], %s578
        %p580 = pneg %p114
        %p581 = pneg %p111
        %s582 = sand.u32 %s32, 1
        %s583 = scalar_lea.sflag [#allocation10], %s582
        %s584 = sand.u32 %s127, 1
        %s585 = smul.addr %s584, 64
        %s586 = scalar_lea.vmem [#allocation11], %s585
        %p587 = pneg %p140
        %p588 = pneg %p137
        %p589 = scmp.lt.s32.totalorder %s36, 1
        %s590 = scalar_select %p589, %s36, 1
        %s591 = scalar_lea.vmem %s4, %s590
        %p592 = pneg %p166
        %p593 = pneg %p163
        %s594 = sand.u32 %s32, 1
        %s595 = scalar_lea.sflag [#allocation13], %s594
        %s596 = sand.u32 %s179, 1
        %s597 = smul.addr %s596, 64
        %s598 = scalar_lea.vmem [#allocation12], %s597
        %p599 = pneg %p192
        %p600 = pneg %p189
        %p601 = scmp.lt.s32.totalorder %s36, 1
        %s602 = scalar_select %p601, %s36, 1
        %s603 = scalar_lea.vmem %s6, %s602
        %p604 = pneg %p218
        %p605 = pneg %p215
        %p606 = scmp.lt.s32.totalorder %s36, 1
        %s607 = scalar_select %p606, %s36, 1
        %s608 = scalar_lea.vmem %s7, %s607
        %p609 = pneg %p244
        %p610 = pneg %p241
        %p611 = scmp.lt.s32.totalorder %s36, 1
        %s612 = scalar_select %p611, %s36, 1
        %s613 = scalar_lea.vmem %s8, %s612
        %p614 = pneg %p270
        %p615 = pneg %p267
        %p616 = pneg %p291
        %p617 = pneg %p288
        %p618 = pneg %p312
        %p619 = pneg %p309
        %p620 = pneg %p333
        %p621 = pneg %p330
        %p622 = pneg %p354
        %p623 = pneg %p351
        %p624 = pneg %p375
        %p625 = pneg %p372
        %p626 = scmp.lt.s32.totalorder %s37, 0
        %s627 = scalar_select %p626, %s37, 0
        %s628 = smul.addr %s627, 8
        %s629 = scalar_lea.vmem %s1, %s628
        %s630 = smul.u32 4, %s37
        %p631 = scmp.lt.s32.totalorder %s36, 1
        %s632 = scalar_select %p631, %s36, 1
        %s633 = scalar_lea.vmem %s4, %s632
        %p634 = scmp.lt.s32.totalorder %s36, 1
        %s635 = scalar_select %p634, %s36, 1
        %s636 = scalar_lea.vmem %s6, %s635
        %p637 = scmp.lt.s32.totalorder %s36, 1
        %s638 = scalar_select %p637, %s36, 1
        %s639 = scalar_lea.vmem %s7, %s638
        %p640 = scmp.lt.s32.totalorder %s36, 1
        %s641 = scalar_select %p640, %s36, 1
        %s642 = scalar_lea.vmem %s8, %s641
        %p644 = scmp.eq.s32.totalorder %s36, 0
        %p645 = scmp.eq.s32.totalorder %s37, 0
        %p646 = pnand %p644, %p645
        %p647 = pneg %p646
        // Predicated region
        $region93: #{tpu_custom_call.1} parent=71 // pred_check
          _
        $region94: #{tpu_custom_call.1} parent=71 // pred_check_branch
          %649 = sbr.rel (%p646) target = $region96
        $region95: #{tpu_custom_call.1} parent=71 // pred_region
          %v650 = vld [vmem:[#allocation6] sm:$0xf]
          %v651 = vld [vmem:[#allocation6 + $0x4] sm:$0xf]
          %v652 = vld [vmem:[#allocation6 + $0x8] sm:$0xf]
          %v653 = vld [vmem:[#allocation6 + $0xc] sm:$0xf]
          %v658 = vunpack.c.l.b16 %v650
          %v659 = vunpack.c.l.b16 %v651
          %v660 = vunpack.c.l.b16 %v652
          %v661 = vunpack.c.l.b16 %v653
          %v662 = vpack.c.b16 %v659, %v658
          %v663 = vpack.c.b16 %v661, %v660
          %666 = vst [vmem:[#allocation2] sm:$0xff] %v662
          %667 = vst [vmem:[#allocation2 + $0x8] sm:$0xff] %v663
          %668 = vst [vmem:[#allocation4] sm:$0x1] 0.0
          %669 = vst [vmem:[#allocation5] sm:$0x1] 0.0
        $region96: #{tpu_custom_call.1} parent=71 // pred_fallthru
          _
        %v670 = vld [vmem:[%s629] sm:$0xff]
        %v671 = vunpack.c.l.s8.bf16 %v670
        %v672 = vunpack.c.h.s8.bf16 %v670
        %v673 = vld [vmem:[#allocation2] sm:$0xff]
        %v674 = vld [vmem:[#allocation2 + $0x8] sm:$0xff]
        %v675 = vld [vmem:[%s540] sm:$0xf]
        %v676 = vld [vmem:[%s540 + $0x4] sm:$0xf]
        %v677 = vld [vmem:[%s540 + $0x8] sm:$0xf]
        %v678 = vld [vmem:[%s540 + $0xc] sm:$0xf]
        %v679 = vunpack.c.l.bf16 %v675
        %v680 = vunpack.c.l.bf16 %v676
        %v681 = vunpack.c.l.bf16 %v677
        %v682 = vunpack.c.l.bf16 %v678
        %vm683 = vcmask 261120
        %v685 = vsel %vm683, %v671, 0
        %v688 = vsel %vm683, %v672, 0
        %690 = vmatprep.subr.bf16.mxu0 0
        %691 = vmatpush1.bf16.msra.mxu0 %v673
        %692 = vmatprep.subr.bf16.mxu0 0
        %693 = vmatpush1.bf16.msra.mxu0 %v674
        %694 = vmatprep.subr.bf16.mxu0 0
        %695 = vmatpush1.bf16.msra.mxu0 0
        %696 = vmatprep.subr.bf16.mxu0 0
        %697 = vmatpush1.bf16.msra.mxu0 0
        %698 = vmatprep.subr.bf16.mxu0 0
        %699 = vmatpush1.bf16.msra.mxu0 0
        %700 = vmatprep.subr.bf16.mxu0 0
        %701 = vmatpush1.bf16.msra.mxu0 0
        %702 = vmatprep.subr.bf16.mxu0 0
        %703 = vmatpush1.bf16.msra.mxu0 0
        %704 = vmatprep.subr.bf16.mxu0 0
        %705 = vmatpush1.bf16.msra.mxu0 0
        %706 = vmatprep.subr.bf16.mxu0 0
        %707 = vmatpush1.bf16.msra.mxu0 0
        %708 = vmatprep.subr.bf16.mxu0 0
        %709 = vmatpush1.bf16.msra.mxu0 0
        %710 = vmatprep.subr.bf16.mxu0 0
        %711 = vmatpush1.bf16.msra.mxu0 0
        %712 = vmatprep.subr.bf16.mxu0 0
        %713 = vmatpush1.bf16.msra.mxu0 0
        %714 = vmatprep.subr.bf16.mxu0 0
        %715 = vmatpush1.bf16.msra.mxu0 0
        %716 = vmatprep.subr.bf16.mxu0 0
        %717 = vmatpush1.bf16.msra.mxu0 0
        %718 = vmatprep.subr.bf16.mxu0 0
        %719 = vmatpush1.bf16.msra.mxu0 0
        %720 = vmatprep.subr.bf16.mxu0 0
        %721 = vmatpush1.bf16.msra.mxu0 0
        %722 = vmatprep.mubr.bf16.mxu0 0
        %723 = vmatmul.mubr.bf16.gmra.mrb[0].mxu0 %v685
        %v724 = vpop.f32.mrb[0].mxu0
        %v725 = vadd.f32 %v679, %v724
        %v726 = vpop.f32.mrb[0].mxu0
        %v727 = vpop.f32.mrb[0].mxu0
        %v728 = vadd.f32 %v680, %v727
        %v729 = vpop.f32.mrb[0].mxu0
        %730 = vmatprep.mubr.bf16.mxu0 0
        %731 = vmatmul.mubr.bf16.gmra.mrb[0].mxu0 %v688
        %v732 = vpop.f32.mrb[0].mxu0
        %v733 = vadd.f32 %v681, %v732
        %v734 = vpop.f32.mrb[0].mxu0
        %v735 = vpop.f32.mrb[0].mxu0
        %v736 = vadd.f32 %v682, %v735
        %v737 = vpop.f32.mrb[0].mxu0
        %738 = vdwg.mxu0
        %v739 = vpack.c.bf16 %v728, %v725
        %v740 = vpack.c.bf16 %v736, %v733
        %v741 = vld [vmem:[%s549] sm:$0xf]
        %v742 = vld [vmem:[%s549 + $0x4] sm:$0xf]
        %v743 = vld [vmem:[%s549 + $0x8] sm:$0xf]
        %v744 = vld [vmem:[%s549 + $0xc] sm:$0xf]
        %v745 = vld [vmem:[%s549 + $0x10] sm:$0xf]
        %v746 = vld [vmem:[%s549 + $0x14] sm:$0xf]
        %v747 = vld [vmem:[%s549 + $0x18] sm:$0xf]
        %v748 = vld [vmem:[%s549 + $0x1c] sm:$0xf]
        %v749 = vld [vmem:[%s549 + $0x20] sm:$0xf]
        %v750 = vld [vmem:[%s549 + $0x24] sm:$0xf]
        %v751 = vld [vmem:[%s549 + $0x28] sm:$0xf]
        %v752 = vld [vmem:[%s549 + $0x2c] sm:$0xf]
        %v753 = vld [vmem:[%s549 + $0x30] sm:$0xf]
        %v754 = vld [vmem:[%s549 + $0x34] sm:$0xf]
        %v755 = vld [vmem:[%s549 + $0x38] sm:$0xf]
        %v756 = vld [vmem:[%s549 + $0x3c] sm:$0xf]
        %v757 = vld [vmem:[%s633] sm:$0x1]
        %v759 = vlaneseq
        %v760 = vshrl.u32 %v759, 7
        %v761 = vsub.s32 0, %v760
        %v762 = vrot.slane %v757, %v761
        %v780 = vunpack.c.l.b16 %v741
        %v781 = vunpack.c.l.b16 %v742
        %v782 = vunpack.c.l.b16 %v743
        %v783 = vunpack.c.l.b16 %v744
        %v784 = vunpack.c.l.b16 %v745
        %v785 = vunpack.c.l.b16 %v746
        %v786 = vunpack.c.l.b16 %v747
        %v787 = vunpack.c.l.b16 %v748
        %v788 = vunpack.c.l.b16 %v749
        %v789 = vunpack.c.l.b16 %v750
        %v790 = vunpack.c.l.b16 %v751
        %v791 = vunpack.c.l.b16 %v752
        %v792 = vunpack.c.l.b16 %v753
        %v793 = vunpack.c.l.b16 %v754
        %v794 = vunpack.c.l.b16 %v755
        %v795 = vunpack.c.l.b16 %v756
        %v796 = vpack.c.b16 %v781, %v780
        %v797 = vpack.c.b16 %v783, %v782
        %v798 = vpack.c.b16 %v785, %v784
        %v799 = vpack.c.b16 %v787, %v786
        %v800 = vpack.c.b16 %v789, %v788
        %v801 = vpack.c.b16 %v791, %v790
        %v802 = vpack.c.b16 %v793, %v792
        %v803 = vpack.c.b16 %v795, %v794
        %812 = vmatprep.subr.bf16.mxu0 0
        %813 = vmatpush1.bf16.msra.mxu0 %v796
        %814 = vmatprep.subr.bf16.mxu0 0
        %815 = vmatpush1.bf16.msra.mxu0 %v797
        %816 = vmatprep.subr.bf16.mxu0 0
        %817 = vmatpush1.bf16.msra.mxu0 %v798
        %818 = vmatprep.subr.bf16.mxu0 0
        %819 = vmatpush1.bf16.msra.mxu0 %v799
        %820 = vmatprep.subr.bf16.mxu0 0
        %821 = vmatpush1.bf16.msra.mxu0 %v800
        %822 = vmatprep.subr.bf16.mxu0 0
        %823 = vmatpush1.bf16.msra.mxu0 %v801
        %824 = vmatprep.subr.bf16.mxu0 0
        %825 = vmatpush1.bf16.msra.mxu0 %v802
        %826 = vmatprep.subr.bf16.mxu0 0
        %827 = vmatpush1.bf16.msra.mxu0 %v803
        %828 = vmatprep.subr.bf16.mxu0 0
        %829 = vmatpush1.bf16.msra.mxu0 0
        %830 = vmatprep.subr.bf16.mxu0 0
        %831 = vmatpush1.bf16.msra.mxu0 0
        %832 = vmatprep.subr.bf16.mxu0 0
        %833 = vmatpush1.bf16.msra.mxu0 0
        %834 = vmatprep.subr.bf16.mxu0 0
        %835 = vmatpush1.bf16.msra.mxu0 0
        %836 = vmatprep.subr.bf16.mxu0 0
        %837 = vmatpush1.bf16.msra.mxu0 0
        %838 = vmatprep.subr.bf16.mxu0 0
        %839 = vmatpush1.bf16.msra.mxu0 0
        %840 = vmatprep.subr.bf16.mxu0 0
        %841 = vmatpush1.bf16.msra.mxu0 0
        %842 = vmatprep.subr.bf16.mxu0 0
        %843 = vmatpush1.bf16.msra.mxu0 0
        %844 = vmatprep.mubr.bf16.mxu0 0
        %845 = vmatmul.mubr.bf16.gmra.mrb[0].mxu0 %v739
        %v846 = vpop.f32.mrb[0].mxu0
        %v847 = vadd.f32 %v762, %v846
        %v848 = vpop.f32.mrb[0].mxu0
        %v849 = vpop.f32.mrb[0].mxu0
        %v850 = vadd.f32 %v762, %v849
        %v851 = vpop.f32.mrb[0].mxu0
        %852 = vmatprep.mubr.bf16.mxu0 0
        %853 = vmatmul.mubr.bf16.gmra.mrb[0].mxu0 %v740
        %v854 = vpop.f32.mrb[0].mxu0
        %v855 = vadd.f32 %v762, %v854
        %v856 = vpop.f32.mrb[0].mxu0
        %v857 = vpop.f32.mrb[0].mxu0
        %v858 = vadd.f32 %v762, %v857
        %v859 = vpop.f32.mrb[0].mxu0
        %860 = vdwg.mxu0
        %v861 = vmax.f32 %v847, 0.0
        %v862 = vmax.f32 %v850, 0.0
        %v863 = vmax.f32 %v855, 0.0
        %v864 = vmax.f32 %v858, 0.0
        %v865 = vpack.c.bf16 %v862, %v861
        %v866 = vpack.c.bf16 %v864, %v863
        %v867 = vld [vmem:[%s558] sm:$0xf]
        %v868 = vld [vmem:[%s558 + $0x4] sm:$0xf]
        %v869 = vld [vmem:[%s558 + $0x8] sm:$0xf]
        %v870 = vld [vmem:[%s558 + $0xc] sm:$0xf]
        %v871 = vld [vmem:[%s558 + $0x10] sm:$0xf]
        %v872 = vld [vmem:[%s558 + $0x14] sm:$0xf]
        %v873 = vld [vmem:[%s558 + $0x18] sm:$0xf]
        %v874 = vld [vmem:[%s558 + $0x1c] sm:$0xf]
        %v875 = vld [vmem:[%s558 + $0x20] sm:$0xf]
        %v876 = vld [vmem:[%s558 + $0x24] sm:$0xf]
        %v877 = vld [vmem:[%s558 + $0x28] sm:$0xf]
        %v878 = vld [vmem:[%s558 + $0x2c] sm:$0xf]
        %v879 = vld [vmem:[%s558 + $0x30] sm:$0xf]
        %v880 = vld [vmem:[%s558 + $0x34] sm:$0xf]
        %v881 = vld [vmem:[%s558 + $0x38] sm:$0xf]
        %v882 = vld [vmem:[%s558 + $0x3c] sm:$0xf]
        %v883 = vld [vmem:[%s636] sm:$0x1]
        %v885 = vlaneseq
        %v886 = vshrl.u32 %v885, 7
        %v887 = vsub.s32 0, %v886
        %v888 = vrot.slane %v883, %v887
        %v906 = vunpack.c.l.b16 %v867
        %v907 = vunpack.c.l.b16 %v868
        %v908 = vunpack.c.l.b16 %v869
        %v909 = vunpack.c.l.b16 %v870
        %v910 = vunpack.c.l.b16 %v871
        %v911 = vunpack.c.l.b16 %v872
        %v912 = vunpack.c.l.b16 %v873
        %v913 = vunpack.c.l.b16 %v874
        %v914 = vunpack.c.l.b16 %v875
        %v915 = vunpack.c.l.b16 %v876
        %v916 = vunpack.c.l.b16 %v877
        %v917 = vunpack.c.l.b16 %v878
        %v918 = vunpack.c.l.b16 %v879
        %v919 = vunpack.c.l.b16 %v880
        %v920 = vunpack.c.l.b16 %v881
        %v921 = vunpack.c.l.b16 %v882
        %v922 = vpack.c.b16 %v907, %v906
        %v923 = vpack.c.b16 %v909, %v908
        %v924 = vpack.c.b16 %v911, %v910
        %v925 = vpack.c.b16 %v913, %v912
        %v926 = vpack.c.b16 %v915, %v914
        %v927 = vpack.c.b16 %v917, %v916
        %v928 = vpack.c.b16 %v919, %v918
        %v929 = vpack.c.b16 %v921, %v920
        %938 = vmatprep.subr.bf16.mxu0 0
        %939 = vmatpush1.bf16.msra.mxu0 %v922
        %940 = vmatprep.subr.bf16.mxu0 0
        %941 = vmatpush1.bf16.msra.mxu0 %v923
        %942 = vmatprep.subr.bf16.mxu0 0
        %943 = vmatpush1.bf16.msra.mxu0 %v924
        %944 = vmatprep.subr.bf16.mxu0 0
        %945 = vmatpush1.bf16.msra.mxu0 %v925
        %946 = vmatprep.subr.bf16.mxu0 0
        %947 = vmatpush1.bf16.msra.mxu0 %v926
        %948 = vmatprep.subr.bf16.mxu0 0
        %949 = vmatpush1.bf16.msra.mxu0 %v927
        %950 = vmatprep.subr.bf16.mxu0 0
        %951 = vmatpush1.bf16.msra.mxu0 %v928
        %952 = vmatprep.subr.bf16.mxu0 0
        %953 = vmatpush1.bf16.msra.mxu0 %v929
        %954 = vmatprep.subr.bf16.mxu0 0
        %955 = vmatpush1.bf16.msra.mxu0 0
        %956 = vmatprep.subr.bf16.mxu0 0
        %957 = vmatpush1.bf16.msra.mxu0 0
        %958 = vmatprep.subr.bf16.mxu0 0
        %959 = vmatpush1.bf16.msra.mxu0 0
        %960 = vmatprep.subr.bf16.mxu0 0
        %961 = vmatpush1.bf16.msra.mxu0 0
        %962 = vmatprep.subr.bf16.mxu0 0
        %963 = vmatpush1.bf16.msra.mxu0 0
        %964 = vmatprep.subr.bf16.mxu0 0
        %965 = vmatpush1.bf16.msra.mxu0 0
        %966 = vmatprep.subr.bf16.mxu0 0
        %967 = vmatpush1.bf16.msra.mxu0 0
        %968 = vmatprep.subr.bf16.mxu0 0
        %969 = vmatpush1.bf16.msra.mxu0 0
        %970 = vmatprep.mubr.bf16.mxu0 0
        %971 = vmatmul.mubr.bf16.gmra.mrb[0].mxu0 %v865
        %v972 = vpop.f32.mrb[0].mxu0
        %v973 = vadd.f32 %v888, %v972
        %v974 = vpop.f32.mrb[0].mxu0
        %v975 = vpop.f32.mrb[0].mxu0
        %v976 = vadd.f32 %v888, %v975
        %v977 = vpop.f32.mrb[0].mxu0
        %978 = vmatprep.mubr.bf16.mxu0 0
        %979 = vmatmul.mubr.bf16.gmra.mrb[0].mxu0 %v866
        %v980 = vpop.f32.mrb[0].mxu0
        %v981 = vadd.f32 %v888, %v980
        %v982 = vpop.f32.mrb[0].mxu0
        %v983 = vpop.f32.mrb[0].mxu0
        %v984 = vadd.f32 %v888, %v983
        %v985 = vpop.f32.mrb[0].mxu0
        %986 = vdwg.mxu0
        %s987 = smul.u32 %s37, 32
        %s988 = scalar_lea.vmem [#allocation3], %s987
        %989 = vst [vmem:[%s988] sm:$0xff] %v973
        %990 = vst [vmem:[%s988 + $0x8] sm:$0xff] %v976
        %991 = vst [vmem:[%s988 + $0x10] sm:$0xff] %v981
        %992 = vst [vmem:[%s988 + $0x18] sm:$0xff] %v984
        %v993 = vlaneseq
        %v994 = vand.u32 %v993, 127
        %v995 = vstv %s987
        %v996 = vadd.s32 %v995, %v994
        %vm997 = vcmp.lt.s32.totalorder %v996, 8
        %v998 = vsel %vm997, 1, 0
        %v999 = vcvt.s32.f32 %v998
        %v1000 = vld [vmem:[#allocation4] sm:$0x1]
        %v1002 = vsel %vm683, %v999, 0
        %1004 = vmatprep.subr.mxu0 0.0
        %1005 = vmatpush1.msra.mxu0 %v973
        %1006 = vmatprep.subr.mxu0 0.0
        %1007 = vmatpush1.msra.mxu0 %v976
        %1008 = vmatprep.subr.mxu0 0.0
        %1009 = vmatpush1.msra.mxu0 %v981
        %1010 = vmatprep.subr.mxu0 0.0
        %1011 = vmatpush1.msra.mxu0 %v984
        %1012 = vmatprep.subr.mxu0 0.0
        %1013 = vmatpush1.msra.mxu0 0.0
        %1014 = vmatprep.subr.mxu0 0.0
        %1015 = vmatpush1.msra.mxu0 0.0
        %1016 = vmatprep.subr.mxu0 0.0
        %1017 = vmatpush1.msra.mxu0 0.0
        %1018 = vmatprep.subr.mxu0 0.0
        %1019 = vmatpush1.msra.mxu0 0.0
        %1020 = vmatprep.subr.mxu0 0.0
        %1021 = vmatpush1.msra.mxu0 0.0
        %1022 = vmatprep.subr.mxu0 0.0
        %1023 = vmatpush1.msra.mxu0 0.0
        %1024 = vmatprep.subr.mxu0 0.0
        %1025 = vmatpush1.msra.mxu0 0.0
        %1026 = vmatprep.subr.mxu0 0.0
        %1027 = vmatpush1.msra.mxu0 0.0
        %1028 = vmatprep.subr.mxu0 0.0
        %1029 = vmatpush1.msra.mxu0 0.0
        %1030 = vmatprep.subr.mxu0 0.0
        %1031 = vmatpush1.msra.mxu0 0.0
        %1032 = vmatprep.subr.mxu0 0.0
        %1033 = vmatpush1.msra.mxu0 0.0
        %1034 = vmatprep.subr.mxu0 0.0
        %1035 = vmatpush1.msra.mxu0 0.0
        %1036 = vmatprep.subr.mxu0 0.0
        %1037 = vmatpush1.msra.mxu0 0.0
        %1038 = vmatprep.subr.mxu0 0.0
        %1039 = vmatpush1.msra.mxu0 0.0
        %1040 = vmatprep.subr.mxu0 0.0
        %1041 = vmatpush1.msra.mxu0 0.0
        %1042 = vmatprep.subr.mxu0 0.0
        %1043 = vmatpush1.msra.mxu0 0.0
        %1044 = vmatprep.subr.mxu0 0.0
        %1045 = vmatpush1.msra.mxu0 0.0
        %1046 = vmatprep.subr.mxu0 0.0
        %1047 = vmatpush1.msra.mxu0 0.0
        %1048 = vmatprep.subr.mxu0 0.0
        %1049 = vmatpush1.msra.mxu0 0.0
        %1050 = vmatprep.subr.mxu0 0.0
        %1051 = vmatpush1.msra.mxu0 0.0
        %1052 = vmatprep.subr.mxu0 0.0
        %1053 = vmatpush1.msra.mxu0 0.0
        %1054 = vmatprep.subr.mxu0 0.0
        %1055 = vmatpush1.msra.mxu0 0.0
        %1056 = vmatprep.subr.mxu0 0.0
        %1057 = vmatpush1.msra.mxu0 0.0
        %1058 = vmatprep.subr.mxu0 0.0
        %1059 = vmatpush1.msra.mxu0 0.0
        %1060 = vmatprep.subr.mxu0 0.0
        %1061 = vmatpush1.msra.mxu0 0.0
        %1062 = vmatprep.subr.mxu0 0.0
        %1063 = vmatpush1.msra.mxu0 0.0
        %1064 = vmatprep.subr.mxu0 0.0
        %1065 = vmatpush1.msra.mxu0 0.0
        %1066 = vmatprep.subr.mxu0 0.0
        %1067 = vmatpush1.msra.mxu0 0.0
        %1068 = vmatprep.mubr.f32.mxu0 0.0
        %1069 = vmatmul.mubr.f32.gmra.mrb[0].mxu0 %v1002
        %v1070 = vpop.f32.mrb[0].mxu0
        %v1071 = vadd.f32 0.0, %v1070
        %v1072 = vpop.f32.mrb[0].mxu0
        %1073 = vdwg.mxu0
        %v1074 = vadd.f32 %v1000, %v1071
        %1075 = vst [vmem:[#allocation4] sm:$0x1] %v1074
        %v1076 = vld [vmem:[#allocation5] sm:$0x1]
        %v1077 = vmul.f32 %v973, %v973
        %v1078 = vmul.f32 %v976, %v976
        %v1079 = vmul.f32 %v981, %v981
        %v1080 = vmul.f32 %v984, %v984
        %1081 = vmatprep.subr.mxu0 0.0
        %1082 = vmatpush1.msra.mxu0 %v1077
        %1083 = vmatprep.subr.mxu0 0.0
        %1084 = vmatpush1.msra.mxu0 %v1078
        %1085 = vmatprep.subr.mxu0 0.0
        %1086 = vmatpush1.msra.mxu0 %v1079
        %1087 = vmatprep.subr.mxu0 0.0
        %1088 = vmatpush1.msra.mxu0 %v1080
        %1089 = vmatprep.subr.mxu0 0.0
        %1090 = vmatpush1.msra.mxu0 0.0
        %1091 = vmatprep.subr.mxu0 0.0
        %1092 = vmatpush1.msra.mxu0 0.0
        %1093 = vmatprep.subr.mxu0 0.0
        %1094 = vmatpush1.msra.mxu0 0.0
        %1095 = vmatprep.subr.mxu0 0.0
        %1096 = vmatpush1.msra.mxu0 0.0
        %1097 = vmatprep.subr.mxu0 0.0
        %1098 = vmatpush1.msra.mxu0 0.0
        %1099 = vmatprep.subr.mxu0 0.0
        %1100 = vmatpush1.msra.mxu0 0.0
        %1101 = vmatprep.subr.mxu0 0.0
        %1102 = vmatpush1.msra.mxu0 0.0
        %1103 = vmatprep.subr.mxu0 0.0
        %1104 = vmatpush1.msra.mxu0 0.0
        %1105 = vmatprep.subr.mxu0 0.0
        %1106 = vmatpush1.msra.mxu0 0.0
        %1107 = vmatprep.subr.mxu0 0.0
        %1108 = vmatpush1.msra.mxu0 0.0
        %1109 = vmatprep.subr.mxu0 0.0
        %1110 = vmatpush1.msra.mxu0 0.0
        %1111 = vmatprep.subr.mxu0 0.0
        %1112 = vmatpush1.msra.mxu0 0.0
        %1113 = vmatprep.subr.mxu0 0.0
        %1114 = vmatpush1.msra.mxu0 0.0
        %1115 = vmatprep.subr.mxu0 0.0
        %1116 = vmatpush1.msra.mxu0 0.0
        %1117 = vmatprep.subr.mxu0 0.0
        %1118 = vmatpush1.msra.mxu0 0.0
        %1119 = vmatprep.subr.mxu0 0.0
        %1120 = vmatpush1.msra.mxu0 0.0
        %1121 = vmatprep.subr.mxu0 0.0
        %1122 = vmatpush1.msra.mxu0 0.0
        %1123 = vmatprep.subr.mxu0 0.0
        %1124 = vmatpush1.msra.mxu0 0.0
        %1125 = vmatprep.subr.mxu0 0.0
        %1126 = vmatpush1.msra.mxu0 0.0
        %1127 = vmatprep.subr.mxu0 0.0
        %1128 = vmatpush1.msra.mxu0 0.0
        %1129 = vmatprep.subr.mxu0 0.0
        %1130 = vmatpush1.msra.mxu0 0.0
        %1131 = vmatprep.subr.mxu0 0.0
        %1132 = vmatpush1.msra.mxu0 0.0
        %1133 = vmatprep.subr.mxu0 0.0
        %1134 = vmatpush1.msra.mxu0 0.0
        %1135 = vmatprep.subr.mxu0 0.0
        %1136 = vmatpush1.msra.mxu0 0.0
        %1137 = vmatprep.subr.mxu0 0.0
        %1138 = vmatpush1.msra.mxu0 0.0
        %1139 = vmatprep.subr.mxu0 0.0
        %1140 = vmatpush1.msra.mxu0 0.0
        %1141 = vmatprep.subr.mxu0 0.0
        %1142 = vmatpush1.msra.mxu0 0.0
        %1143 = vmatprep.subr.mxu0 0.0
        %1144 = vmatpush1.msra.mxu0 0.0
        %1145 = vmatprep.mubr.f32.mxu0 0.0
        %1146 = vmatmul.mubr.f32.gmra.mrb[0].mxu0 %v1002
        %v1147 = vpop.f32.mrb[0].mxu0
        %v1148 = vadd.f32 0.0, %v1147
        %v1149 = vpop.f32.mrb[0].mxu0
        %1150 = vdwg.mxu0
        %v1151 = vadd.f32 %v1076, %v1148
        %1152 = vst [vmem:[#allocation5] sm:$0x1] %v1151
        // Predicated region
        $region97: #{tpu_custom_call.1} parent=71 // pred_check
          %p1153 = pneg %p645
        $region98: #{tpu_custom_call.1} parent=71 // pred_check_branch
          %1155 = sbr.rel (%p1153) target = $region100
        $region99: #{tpu_custom_call.1} parent=71 // pred_region
          %v1156 = vld [vmem:[#allocation4] sm:$0x1]
          %v1157 = vmul.f32 %v1156, 0.125
          %v1158 = vld [vmem:[#allocation5] sm:$0x1]
          %v1159 = vmul.f32 %v1158, 0.125
          %v1160 = vmul.f32 %v1157, %v1157
          %v1161 = vsub.f32 %v1159, %v1160
          %v1162 = vmax.f32 %v1161, 0.0
          %v1163 = vld [vmem:[%s639] sm:$0x1]
          %v1164 = vadd.f32 %v1162, 1e-05
          %v1165 = vrsqrt.pop %v1164
          %v1166 = vmul.f32 %v1163, %v1165
          %v1167 = vld [vmem:[%s642] sm:$0x1]
          %v1168 = vmul.f32 %v1157, %v1166
          %v1169 = vsub.f32 %v1167, %v1168
          %v1170 = vld [vmem:[#allocation3] sm:$0xff]
          %v1171 = vld [vmem:[#allocation3 + $0x8] sm:$0xff]
          %v1172 = vld [vmem:[#allocation3 + $0x10] sm:$0xff]
          %v1173 = vld [vmem:[#allocation3 + $0x18] sm:$0xff]
          %v1175 = vlaneseq
          %v1176 = vshrl.u32 %v1175, 7
          %v1177 = vsub.s32 0, %v1176
          %v1178 = vrot.slane %v1166, %v1177
          %v1180 = vmul.f32 %v1170, %v1178
          %v1181 = vmul.f32 %v1171, %v1178
          %v1182 = vmul.f32 %v1172, %v1178
          %v1183 = vmul.f32 %v1173, %v1178
          %v1185 = vlaneseq
          %v1186 = vshrl.u32 %v1185, 7
          %v1187 = vsub.s32 0, %v1186
          %v1188 = vrot.slane %v1169, %v1187
          %v1190 = vadd.f32 %v1180, %v1188
          %v1191 = vadd.f32 %v1181, %v1188
          %v1192 = vadd.f32 %v1182, %v1188
          %v1193 = vadd.f32 %v1183, %v1188
          %p1194 = scmp.eq.s32.totalorder %s36, 1
          %v1195 = vmax.f32 %v1190, 0.0
          %v1196 = vmax.f32 %v1191, 0.0
          %v1197 = vmax.f32 %v1192, 0.0
          %v1198 = vmax.f32 %v1193, 0.0
          %s1199 = scalar_select %p1194, 1, 0
          %v1200 = vstv %s1199
          %vm1201 = vcmp.eq.s32.totalorder %v1200, 1
          %v1202 = vsel %vm1201, %v1190, %v1195
          %v1203 = vsel %vm1201, %v1191, %v1196
          %v1204 = vsel %vm1201, %v1192, %v1197
          %v1205 = vsel %vm1201, %v1193, %v1198
          %v1206 = vpack.c.bf16 %v1203, %v1202
          %v1207 = vpack.c.bf16 %v1205, %v1204
          %1208 = vst [vmem:[#allocation2] sm:$0xff] %v1206
          %1209 = vst [vmem:[#allocation2 + $0x8] sm:$0xff] %v1207
          %1210 = vst [vmem:[#allocation4] sm:$0x1] 0.0
          %1211 = vst [vmem:[#allocation5] sm:$0x1] 0.0
        $region100: #{tpu_custom_call.1} parent=71 // pred_fallthru
          _
        %p1212 = scmp.eq.s32.totalorder %s36, 1
        %p1213 = pnand %p1212, %p645
        %p1214 = pneg %p1213
        // Predicated region
        $region101: #{tpu_custom_call.1} parent=71 // pred_check
          _
        $region102: #{tpu_custom_call.1} parent=71 // pred_check_branch
          %1216 = sbr.rel (%p1213) target = $region104
        $region103: #{tpu_custom_call.1} parent=71 // pred_region
          %v1217 = vld [vmem:[%s9] sm:$0xf]
          %v1218 = vld [vmem:[#allocation2] sm:$0xff]
          %v1219 = vld [vmem:[#allocation2 + $0x8] sm:$0xff]
          %v1221 = vsel %vm683, %v1217, 0
          %1223 = vmatprep.subr.bf16.mxu0 0
          %1224 = vmatpush1.bf16.msra.mxu0 %v1218
          %1225 = vmatprep.subr.bf16.mxu0 0
          %1226 = vmatpush1.bf16.msra.mxu0 %v1219
          %1227 = vmatprep.subr.bf16.mxu0 0
          %1228 = vmatpush1.bf16.msra.mxu0 0
          %1229 = vmatprep.subr.bf16.mxu0 0
          %1230 = vmatpush1.bf16.msra.mxu0 0
          %1231 = vmatprep.subr.bf16.mxu0 0
          %1232 = vmatpush1.bf16.msra.mxu0 0
          %1233 = vmatprep.subr.bf16.mxu0 0
          %1234 = vmatpush1.bf16.msra.mxu0 0
          %1235 = vmatprep.subr.bf16.mxu0 0
          %1236 = vmatpush1.bf16.msra.mxu0 0
          %1237 = vmatprep.subr.bf16.mxu0 0
          %1238 = vmatpush1.bf16.msra.mxu0 0
          %1239 = vmatprep.subr.bf16.mxu0 0
          %1240 = vmatpush1.bf16.msra.mxu0 0
          %1241 = vmatprep.subr.bf16.mxu0 0
          %1242 = vmatpush1.bf16.msra.mxu0 0
          %1243 = vmatprep.subr.bf16.mxu0 0
          %1244 = vmatpush1.bf16.msra.mxu0 0
          %1245 = vmatprep.subr.bf16.mxu0 0
          %1246 = vmatpush1.bf16.msra.mxu0 0
          %1247 = vmatprep.subr.bf16.mxu0 0
          %1248 = vmatpush1.bf16.msra.mxu0 0
          %1249 = vmatprep.subr.bf16.mxu0 0
          %1250 = vmatpush1.bf16.msra.mxu0 0
          %1251 = vmatprep.subr.bf16.mxu0 0
          %1252 = vmatpush1.bf16.msra.mxu0 0
          %1253 = vmatprep.subr.bf16.mxu0 0
          %1254 = vmatpush1.bf16.msra.mxu0 0
          %1255 = vmatprep.mubr.bf16.mxu0 0
          %1256 = vmatmul.mubr.bf16.gmra.mrb[0].mxu0 %v1221
          %v1257 = vpop.f32.mrb[0].mxu0
          %v1258 = vadd.f32 0.0, %v1257
          %v1259 = vpop.f32.mrb[0].mxu0
          %v1260 = vpop.f32.mrb[0].mxu0
          %v1261 = vpop.f32.mrb[0].mxu0
          %1262 = vdwg.mxu0
          %v1263 = vld [vmem:[%s10] sm:$0xff]
          %1265 = vset.pattern.permute.xlu0 0
          %1266 = vperm.xlu0 %1265, %v1263
          %v1267 = vpop.permute.xlu0 %1266
          %v1269 = vmul.f32 %v1258, %v1267
          %v1270 = vpack.c.bf16 %v1269, %v1269
          %v1271 = vld [vmem:[#allocation14] sm:$0xf]
          %v1272 = vld [vmem:[#allocation14 + $0x4] sm:$0xf]
          %v1273 = vld [vmem:[#allocation14 + $0x8] sm:$0xf]
          %v1274 = vld [vmem:[#allocation14 + $0xc] sm:$0xf]
          %v1275 = vld [vmem:[#allocation14 + $0x10] sm:$0xf]
          %v1276 = vld [vmem:[#allocation14 + $0x14] sm:$0xf]
          %v1277 = vld [vmem:[#allocation14 + $0x18] sm:$0xf]
          %v1278 = vld [vmem:[#allocation14 + $0x1c] sm:$0xf]
          %v1279 = vld [vmem:[#allocation14 + $0x20] sm:$0xf]
          %v1280 = vld [vmem:[#allocation14 + $0x24] sm:$0xf]
          %v1281 = vld [vmem:[#allocation14 + $0x28] sm:$0xf]
          %v1282 = vld [vmem:[#allocation14 + $0x2c] sm:$0xf]
          %v1283 = vld [vmem:[#allocation14 + $0x30] sm:$0xf]
          %v1284 = vld [vmem:[#allocation14 + $0x34] sm:$0xf]
          %v1285 = vld [vmem:[#allocation14 + $0x38] sm:$0xf]
          %v1286 = vld [vmem:[#allocation14 + $0x3c] sm:$0xf]
          %v1287 = vld [vmem:[%s12] sm:$0x1]
          %v1289 = vlaneseq
          %v1290 = vshrl.u32 %v1289, 7
          %v1291 = vsub.s32 0, %v1290
          %v1292 = vrot.slane %v1287, %v1291
          %v1310 = vunpack.c.l.b16 %v1271
          %v1311 = vunpack.c.l.b16 %v1272
          %v1312 = vunpack.c.l.b16 %v1273
          %v1313 = vunpack.c.l.b16 %v1274
          %v1314 = vunpack.c.l.b16 %v1275
          %v1315 = vunpack.c.l.b16 %v1276
          %v1316 = vunpack.c.l.b16 %v1277
          %v1317 = vunpack.c.l.b16 %v1278
          %v1318 = vunpack.c.l.b16 %v1279
          %v1319 = vunpack.c.l.b16 %v1280
          %v1320 = vunpack.c.l.b16 %v1281
          %v1321 = vunpack.c.l.b16 %v1282
          %v1322 = vunpack.c.l.b16 %v1283
          %v1323 = vunpack.c.l.b16 %v1284
          %v1324 = vunpack.c.l.b16 %v1285
          %v1325 = vunpack.c.l.b16 %v1286
          %v1326 = vpack.c.b16 %v1311, %v1310
          %v1327 = vpack.c.b16 %v1313, %v1312
          %v1328 = vpack.c.b16 %v1315, %v1314
          %v1329 = vpack.c.b16 %v1317, %v1316
          %v1330 = vpack.c.b16 %v1319, %v1318
          %v1331 = vpack.c.b16 %v1321, %v1320
          %v1332 = vpack.c.b16 %v1323, %v1322
          %v1333 = vpack.c.b16 %v1325, %v1324
          %1342 = vmatprep.subr.bf16.mxu0 0
          %1343 = vmatpush1.bf16.msra.mxu0 %v1326
          %1344 = vmatprep.subr.bf16.mxu0 0
          %1345 = vmatpush1.bf16.msra.mxu0 %v1327
          %1346 = vmatprep.subr.bf16.mxu0 0
          %1347 = vmatpush1.bf16.msra.mxu0 %v1328
          %1348 = vmatprep.subr.bf16.mxu0 0
          %1349 = vmatpush1.bf16.msra.mxu0 %v1329
          %1350 = vmatprep.subr.bf16.mxu0 0
          %1351 = vmatpush1.bf16.msra.mxu0 %v1330
          %1352 = vmatprep.subr.bf16.mxu0 0
          %1353 = vmatpush1.bf16.msra.mxu0 %v1331
          %1354 = vmatprep.subr.bf16.mxu0 0
          %1355 = vmatpush1.bf16.msra.mxu0 %v1332
          %1356 = vmatprep.subr.bf16.mxu0 0
          %1357 = vmatpush1.bf16.msra.mxu0 %v1333
          %1358 = vmatprep.subr.bf16.mxu0 0
          %1359 = vmatpush1.bf16.msra.mxu0 0
          %1360 = vmatprep.subr.bf16.mxu0 0
          %1361 = vmatpush1.bf16.msra.mxu0 0
          %1362 = vmatprep.subr.bf16.mxu0 0
          %1363 = vmatpush1.bf16.msra.mxu0 0
          %1364 = vmatprep.subr.bf16.mxu0 0
          %1365 = vmatpush1.bf16.msra.mxu0 0
          %1366 = vmatprep.subr.bf16.mxu0 0
          %1367 = vmatpush1.bf16.msra.mxu0 0
          %1368 = vmatprep.subr.bf16.mxu0 0
          %1369 = vmatpush1.bf16.msra.mxu0 0
          %1370 = vmatprep.subr.bf16.mxu0 0
          %1371 = vmatpush1.bf16.msra.mxu0 0
          %1372 = vmatprep.subr.bf16.mxu0 0
          %1373 = vmatpush1.bf16.msra.mxu0 0
          %1374 = vmatprep.mubr.bf16.mxu0 0
          %1375 = vmatmul.mubr.bf16.gmra.mrb[0].mxu0 %v1270
          %v1376 = vpop.f32.mrb[0].mxu0
          %v1377 = vadd.f32 %v1292, %v1376
          %v1378 = vpop.f32.mrb[0].mxu0
          %v1379 = vpop.f32.mrb[0].mxu0
          %v1380 = vpop.f32.mrb[0].mxu0
          %1381 = vdwg.mxu0
          %1382 = vst [vmem:[#allocation15] sm:$0xff] %v1377
        $region104: #{tpu_custom_call.1} parent=71 // pred_fallthru
          _
        // Predicated region
        $region105: #{tpu_custom_call.1} parent=71 // pred_check
          %p1383 = pneg %p372
        $region106: #{tpu_custom_call.1} parent=71 // pred_check_branch
          %1385 = sbr.rel (%p1383) target = $region108
        $region107: #{tpu_custom_call.1} parent=71 // pred_region
          %s1387 = ssub.s32 128, 128
          %1388 = vsyncadd [#allocation8], %s1387
          %s1390 = sshll.u32 [#allocation15], 4
          %s1391 = int_to_ptr.vmem [resolvable:$true] %s1390
          %1393 = dma.vmem_to_hbm [thread:$0]  %s1391, 128, %s13, [#allocation8]
        $region108: #{tpu_custom_call.1} parent=71 // pred_fallthru
          _
        // Predicated region
        $region109: #{tpu_custom_call.1} parent=71 // pred_check
          %p1394 = pneg %p372
        $region110: #{tpu_custom_call.1} parent=71 // pred_check_branch
          %1396 = sbr.rel (%p1394) target = $region112
        $region111: #{tpu_custom_call.1} parent=71 // pred_region
          %1397 = dma.done [#allocation8], 128
        $region112: #{tpu_custom_call.1} parent=71 // pred_fallthru
          _
      $region72: #{tpu_custom_call.1} parent=5 // pred_fallthru
        _
      %p1398 = scmp.le.s32.totalorder 2, %s27
      // Predicated region
      $region113: #{tpu_custom_call.1} parent=5 // pred_check
        %p1399 = pneg %p1398
      $region114: #{tpu_custom_call.1} parent=5 // pred_check_branch
        %1401 = sbr.rel (%p1399) target = $region116
      $region115: #{tpu_custom_call.1} parent=5 // pred_region
        %s1402 = ssub.s32 %s27, 2
      $region116: #{tpu_custom_call.1} parent=5 // pred_fallthru
        _
    $region6: #{tpu_custom_call.1} parent=1 // loop_footer
      %s31 = sadd.s32 1, %s27
    $region7: #{tpu_custom_call.1} parent=1 // loop_footer_branch
      %26 = sbr.rel target = $region3
    $region8: #{tpu_custom_call.1} parent=1 // loop_exit
      _
    %1403 = vsyncpa [#allocation7], 1
    %s1404 = scalar_lea.sflag [#allocation7], 1
    %1405 = vsyncpa %s1404, 1
    %1406 = vsyncpa [#allocation10], 1
    %s1407 = scalar_lea.sflag [#allocation10], 1
    %1408 = vsyncpa %s1407, 1
    %1409 = vsyncpa [#allocation13], 1
    %s1410 = scalar_lea.sflag [#allocation13], 1
    %1411 = vsyncpa %s1410, 1
    %1412 = vsyncpa [#allocation8], 1
    %s1413 = scalar_lea.sflag [#allocation8], 1
    %1414 = vsyncpa %s1413, 1

</llo_original>
